<compile_context>
chip_gen: v6e
topology: v6e:2x2x1
jax: 0.10.0
libtpu: 0.0.40
codegen_flags: <defaults>
</compile_context>

<pallas_src>
import jax
import jax.numpy as jnp
from jax import lax
from jax.experimental import pallas as pl
from jax.experimental.pallas import tpu as pltpu

# --- constants from the PyTorch module ---
N_FFNS = 2
N_INTERVALS = 40
STATE_LEN = 17
ACTION_DIM = 16
HIDDEN = 128          # hidden_dim
EMBED_DIM = 10
BBOX = 256
STATE_HOT = STATE_LEN * EMBED_DIM   # 170
SEQ_LEN = 1

# ---- packed bias / LayerNorm-param slab layout -------------------------------
# (name, slice_width); every entry starts at a 128-lane-aligned offset so the
# in-kernel static slices are lane-aligned (no cross-lane shifts).
_BIAS_LAYOUT = (
    ("bbll_b", 64),          # bbll bias with the positional encoding folded in
    ("lle_b", HIDDEN),
    ("f1_g", HIDDEN), ("f1_be", HIDDEN), ("f1_b1", 2 * HIDDEN), ("f1_b2", HIDDEN),
    ("f2_g", HIDDEN), ("f2_be", HIDDEN), ("f2_b1", 2 * HIDDEN), ("f2_b2", HIDDEN),
    ("inlin_b", 2 * HIDDEN),
    ("finln_b", 4 * HIDDEN),
    ("fc2_b", HIDDEN // 2),
    ("fc3_b", 128),          # real bias in lane 0; fc3_w is zero-padded to 128 cols
)


def _build_bias_offsets():
    offs, off = {}, 0
    for name, width in _BIAS_LAYOUT:
        offs[name] = (off, width)
        off += ((width + 127) // 128) * 128
    return offs, off


_BIAS_OFFS, _BIAS_TOTAL = _build_bias_offsets()


def _pack_biases(entries):
    slab = jnp.zeros((1, _BIAS_TOTAL), jnp.float32)
    for name, arr in entries.items():
        off, _ = _BIAS_OFFS[name]
        flat = jnp.asarray(arr, jnp.float32).reshape(-1)
        slab = slab.at[0, off:off + flat.shape[0]].set(flat)
    return slab


def _slab_slice(slab, name):
    off, width = _BIAS_OFFS[name]
    return slab[:, off:off + width]


# ---------------- in-kernel helpers (traced into the kernel body) -------------
def _layernorm(x, g, b, eps=1e-5):
    # PyTorch LayerNorm: biased variance over the last dim, eps inside sqrt.
    mu = jnp.mean(x, axis=-1, keepdims=True)
    var = jnp.mean((x - mu) ** 2, axis=-1, keepdims=True)
    return (x - mu) * lax.rsqrt(var + eps) * g + b


def _elu(x):
    return jnp.where(x > 0, x, jnp.exp(jnp.minimum(x, 0.0)) - 1.0)


def _mm(x, w):
    # bf16 MXU operands, f32 accumulation. astype is a no-op if x is already bf16.
    return jnp.dot(x.astype(jnp.bfloat16), w, preferred_element_type=jnp.float32)


def _ffn(x, g, be, w1, b1, w2, b2):
    # FFN.forward: norm -> linear1 -> ELU -> dropout(p=0) -> linear2 -> ELU -> same norm
    xn = _layernorm(x, g, be)
    xh = _elu(_mm(xn, w1) + b1)
    return _layernorm(_elu(_mm(xh, w2) + b2), g, be)


# ------------------------------- the kernel -----------------------------------
def critic_kernel(emb_ref, bv_ref, bias_ref,
                  bbll_w, lle_w_emb, lle_w_bb,
                  f1_w1, f1_w2, f2_w1, f2_w2,
                  inlin_w, finln_w, fc2_w, fc3_w,
                  out_ref):
    def bias(name):
        off, width = _BIAS_OFFS[name]
        return bias_ref[:, off:off + width]          # (1, width), 128-aligned slice

    # ----- Net.forward -----
    # bbll(b_vec + pe) with pe pre-folded into the bias, then a freshly-built
    # nn.LayerNorm(64) (weight=1, bias=0).
    bv = _mm(bv_ref[...], bbll_w[...]) + bias("bbll_b")                   # (bb, 64)
    bv = _layernorm(bv, 1.0, 0.0)

    # cat([emb, bv], -1) @ W  ==  emb @ W[:170] + bv @ W[170:]  (avoids lane concat)
    x = (_mm(emb_ref[...], lle_w_emb[...]) + _mm(bv, lle_w_bb[...])
         + bias("lle_b"))                                                 # (bb, 128)

    x = _ffn(x, bias("f1_g"), bias("f1_be"),
             f1_w1[...], bias("f1_b1"), f1_w2[...], bias("f1_b2"))
    x = _ffn(x, bias("f2_g"), bias("f2_be"),
             f2_w1[...], bias("f2_b1"), f2_w2[...], bias("f2_b2"))

    x = _mm(x, inlin_w[...]) + bias("inlin_b")                            # (bb, 256)
    x_net = jnp.maximum(_mm(x, finln_w[...]) + bias("finln_b"), 0.0)      # (bb, 512) ReLU

    # ----- Critic head: value = fc3(dropout(p=0)(fc2(x_net))) -----
    h = _mm(x_net, fc2_w[...]) + bias("fc2_b")                            # (bb, 64)
    # fc3 padded to 128 output lanes -> lane-dense unmasked store; value in lane 0.
    out_ref[...] = _mm(h, fc3_w[...]) + bias("fc3_b")                     # (bb, 128)


# --------------------------- parameter construction ---------------------------
def init_params(key, hidden_dim=HIDDEN):
    ks = iter(jax.random.split(key, 64))

    def lin(in_f, out_f):
        w = jax.random.normal(next(ks), (in_f, out_f), jnp.float32) / jnp.sqrt(float(in_f))
        b = jax.random.normal(next(ks), (1, out_f), jnp.float32) * 0.01
        return w, b

    p = {}
    p['embed'] = 0.1 * jax.random.normal(
        next(ks), (STATE_LEN * N_INTERVALS, EMBED_DIM), jnp.float32)

    # f32 master weights (already stored [in, out], i.e. pre-transposed vs torch)
    bbll_w, bbll_b = lin(BBOX, BBOX // 4)
    lle_w, lle_b = lin(STATE_HOT + BBOX // 4, hidden_dim)
    f1_w1, f1_b1 = lin(hidden_dim, 2 * hidden_dim)
    f1_w2, f1_b2 = lin(2 * hidden_dim, hidden_dim)
    f2_w1, f2_b1 = lin(hidden_dim, 2 * hidden_dim)
    f2_w2, f2_b2 = lin(2 * hidden_dim, hidden_dim)
    inlin_w, inlin_b = lin(hidden_dim, 2 * hidden_dim)
    finln_w, finln_b = lin(hidden_dim * 2, 4 * hidden_dim)
    fc2_w, fc2_b = lin(4 * hidden_dim, hidden_dim // 2)
    fc3_w, fc3_b = lin(hidden_dim // 2, 1)

    # Fold the fixed positional encoding into the bbll bias (exact in f32):
    # bbll(b_vec + pe) == b_vec @ W + (pe @ W + b)
    pe_half = jnp.sin(jnp.arange(128, dtype=jnp.float32) / 50.0)
    pe = jnp.concatenate([pe_half, pe_half])[None, :]                     # (1, 256)
    bbll_b_eff = pe @ bbll_w + bbll_b                                     # (1, 64)

    # Pad fc3 to 128 output lanes (real column 0) for a lane-dense final store.
    fc3_w_pad = jnp.zeros((hidden_dim // 2, 128), jnp.float32).at[:, :1].set(fc3_w)
    fc3_b_pad = jnp.zeros((1, 128), jnp.float32).at[:, :1].set(fc3_b)

    bf16 = jnp.bfloat16
    p['bbll_w'] = bbll_w.astype(bf16)
    p['lle_w_emb'] = lle_w[:STATE_HOT].astype(bf16)
    p['lle_w_bb'] = lle_w[STATE_HOT:].astype(bf16)
    p['f1_w1'] = f1_w1.astype(bf16); p['f1_w2'] = f1_w2.astype(bf16)
    p['f2_w1'] = f2_w1.astype(bf16); p['f2_w2'] = f2_w2.astype(bf16)
    p['inlin_w'] = inlin_w.astype(bf16)
    p['finln_w'] = finln_w.astype(bf16)
    p['fc2_w'] = fc2_w.astype(bf16)
    p['fc3_w'] = fc3_w_pad.astype(bf16)

    p['bias_slab'] = _pack_biases({
        'bbll_b': bbll_b_eff, 'lle_b': lle_b,
        'f1_g': jnp.ones((1, hidden_dim), jnp.float32),
        'f1_be': jnp.zeros((1, hidden_dim), jnp.float32),
        'f1_b1': f1_b1, 'f1_b2': f1_b2,
        'f2_g': jnp.ones((1, hidden_dim), jnp.float32),
        'f2_be': jnp.zeros((1, hidden_dim), jnp.float32),
        'f2_b1': f2_b1, 'f2_b2': f2_b2,
        'inlin_b': inlin_b, 'finln_b': finln_b,
        'fc2_b': fc2_b, 'fc3_b': fc3_b_pad,
    })
    return p


# --------------------------------- wrapper -------------------------------------
def _embed_lookup(params, state):
    # Glue: nn.Embedding gather (no clean in-kernel gather on TPU Pallas).
    B = state.shape[0]
    strides = jnp.arange(0, STATE_LEN * N_INTERVALS, N_INTERVALS, dtype=jnp.int32)[None, :]
    idx = state.astype(jnp.int32) + strides                               # (B, 17)
    return jnp.take(params['embed'], idx, axis=0).reshape(B, STATE_HOT)   # (B, 170)


def critic_forward(params, state, b_vec):
    """state: (B, state_len) interval indices; b_vec: (B, 256). Returns value (B, 1)."""
    B = state.shape[0]

    emb = _embed_lookup(params, state).astype(jnp.bfloat16)
    bv = b_vec.astype(jnp.bfloat16)   # positional encoding already folded into bbll bias

    # Pad the batch to a whole number of (>=8-row) tiles; tile 128 rows when large
    # so a "parallel" 1-D grid lets v7x's two TensorCores split the work.
    block_b = 128 if B >= 128 else ((B + 7) // 8) * 8
    b_pad = ((B + block_b - 1) // block_b) * block_b
    if b_pad != B:
        emb = jnp.pad(emb, ((0, b_pad - B), (0, 0)))
        bv = jnp.pad(bv, ((0, b_pad - B), (0, 0)))
    n_blocks = b_pad // block_b

    act = lambda feat: pl.BlockSpec((block_b, feat), lambda i: (i, 0))
    wspec = lambda a: pl.BlockSpec(a.shape, lambda i: (0, 0))   # VMEM-resident weight

    p = params
    weights = [p['bbll_w'], p['lle_w_emb'], p['lle_w_bb'],
               p['f1_w1'], p['f1_w2'], p['f2_w1'], p['f2_w2'],
               p['inlin_w'], p['finln_w'], p['fc2_w'], p['fc3_w']]

    out = pl.pallas_call(
        critic_kernel,
        out_shape=jax.ShapeDtypeStruct((b_pad, 128), jnp.float32),
        grid_spec=pltpu.PrefetchScalarGridSpec(
            num_scalar_prefetch=0,
            grid=(n_blocks,),
            in_specs=[act(STATE_HOT), act(BBOX), wspec(p['bias_slab'])]
                     + [wspec(w) for w in weights],
            out_specs=pl.BlockSpec((block_b, 128), lambda i: (i, 0)),
        ),
        compiler_params=pltpu.CompilerParams(
            dimension_semantics=("parallel",)),
    )(emb, bv, p['bias_slab'], *weights)

    # Critic.forward returns only the scalar value per row.
    return out[:B, :1]


# ----------------------- pure-JAX reference (same bf16 weights) ----------------
def critic_reference(params, state, b_vec):
    p = params
    slab = p['bias_slab']
    b = lambda name: _slab_slice(slab, name)

    emb = _embed_lookup(params, state).astype(jnp.bfloat16)
    bv_in = b_vec.astype(jnp.bfloat16)

    bv = _layernorm(_mm(bv_in, p['bbll_w']) + b('bbll_b'), 1.0, 0.0)
    x = _mm(emb, p['lle_w_emb']) + _mm(bv, p['lle_w_bb']) + b('lle_b')
    x = _ffn(x, b('f1_g'), b('f1_be'), p['f1_w1'], b('f1_b1'), p['f1_w2'], b('f1_b2'))
    x = _ffn(x, b('f2_g'), b('f2_be'), p['f2_w1'], b('f2_b1'), p['f2_w2'], b('f2_b2'))
    x = _mm(x, p['inlin_w']) + b('inlin_b')
    x_net = jnp.maximum(_mm(x, p['finln_w']) + b('finln_b'), 0.0)
    h = _mm(x_net, p['fc2_w']) + b('fc2_b')
    value = _mm(h, p['fc3_w']) + b('fc3_b')
    return value[:, :1]


if __name__ == "__main__":
    key = jax.random.PRNGKey(0)
    k_param, k_state, k_bvec = jax.random.split(key, 3)

    params = init_params(k_param)

    B = 2
    # state entries in [0, n_intervals): valid embedding indices after adding strides.
    state = jax.random.randint(k_state, (B, STATE_LEN), 0, N_INTERVALS).astype(jnp.float32)
    b_vec = jax.random.normal(k_bvec, (B, BBOX), jnp.float32)

    value = jax.jit(critic_forward)(params, state, b_vec)
    jax.block_until_ready(value)

    assert value.shape == (B, 1) and value.dtype == jnp.float32
    assert bool(jnp.all(jnp.isfinite(value)))

    ref = jax.jit(critic_reference)(params, state, b_vec)
    jax.block_until_ready(ref)
    assert bool(jnp.allclose(value, ref, rtol=2e-2, atol=2e-2))

    print("KERNEL_OK")
</pallas_src>

<mosaic_0001>
module attributes {stable_mosaic.version = 11 : i64} {
  func.func @critic_kernel(%arg0: i32, %arg1: memref<8x170xbf16, #tpu.memory_space<vmem>>, %arg2: memref<8x256xbf16, #tpu.memory_space<vmem>>, %arg3: memref<1x2560xf32, #tpu.memory_space<vmem>>, %arg4: memref<256x64xbf16, #tpu.memory_space<vmem>>, %arg5: memref<170x128xbf16, #tpu.memory_space<vmem>>, %arg6: memref<64x128xbf16, #tpu.memory_space<vmem>>, %arg7: memref<128x256xbf16, #tpu.memory_space<vmem>>, %arg8: memref<256x128xbf16, #tpu.memory_space<vmem>>, %arg9: memref<128x256xbf16, #tpu.memory_space<vmem>>, %arg10: memref<256x128xbf16, #tpu.memory_space<vmem>>, %arg11: memref<128x256xbf16, #tpu.memory_space<vmem>>, %arg12: memref<256x512xbf16, #tpu.memory_space<vmem>>, %arg13: memref<512x64xbf16, #tpu.memory_space<vmem>>, %arg14: memref<64x128xbf16, #tpu.memory_space<vmem>>, %arg15: memref<8x128xf32, #tpu.memory_space<vmem>>) attributes {dimension_semantics = [#tpu.dimension_semantics<parallel>], iteration_bounds = array<i64: 1>, scalar_prefetch = 0 : i64, scratch_operands = 0 : i64, tpu.core_type = #tpu.core_type<tc>, window_params = [{transform_indices = @transform_0, window_bounds = array<i64: 8, 170>}, {transform_indices = @transform_1, window_bounds = array<i64: 8, 256>}, {pipeline_mode = #tpu.pipeline_mode<synchronous>, transform_indices = @transform_2, window_bounds = array<i64: 1, 2560>}, {pipeline_mode = #tpu.pipeline_mode<synchronous>, transform_indices = @transform_3, window_bounds = array<i64: 256, 64>}, {pipeline_mode = #tpu.pipeline_mode<synchronous>, transform_indices = @transform_4, window_bounds = array<i64: 170, 128>}, {pipeline_mode = #tpu.pipeline_mode<synchronous>, transform_indices = @transform_5, window_bounds = array<i64: 64, 128>}, {pipeline_mode = #tpu.pipeline_mode<synchronous>, transform_indices = @transform_6, window_bounds = array<i64: 128, 256>}, {pipeline_mode = #tpu.pipeline_mode<synchronous>, transform_indices = @transform_7, window_bounds = array<i64: 256, 128>}, {pipeline_mode = #tpu.pipeline_mode<synchronous>, transform_indices = @transform_8, window_bounds = array<i64: 128, 256>}, {pipeline_mode = #tpu.pipeline_mode<synchronous>, transform_indices = @transform_9, window_bounds = array<i64: 256, 128>}, {pipeline_mode = #tpu.pipeline_mode<synchronous>, transform_indices = @transform_10, window_bounds = array<i64: 128, 256>}, {pipeline_mode = #tpu.pipeline_mode<synchronous>, transform_indices = @transform_11, window_bounds = array<i64: 256, 512>}, {pipeline_mode = #tpu.pipeline_mode<synchronous>, transform_indices = @transform_12, window_bounds = array<i64: 512, 64>}, {pipeline_mode = #tpu.pipeline_mode<synchronous>, transform_indices = @transform_13, window_bounds = array<i64: 64, 128>}, {transform_indices = @transform_14, window_bounds = array<i64: 8, 128>}]} {
    %c0 = arith.constant 0 : index
    %c0_0 = arith.constant 0 : index
    %0 = vector.load %arg2[%c0, %c0_0] : memref<8x256xbf16, #tpu.memory_space<vmem>>, vector<8x256xbf16>
    %c0_1 = arith.constant 0 : index
    %c0_2 = arith.constant 0 : index
    %1 = vector.load %arg4[%c0_1, %c0_2] : memref<256x64xbf16, #tpu.memory_space<vmem>>, vector<256x64xbf16>
    %cst = arith.constant dense<0.000000e+00> : vector<8x64xf32>
    %2 = tpu.matmul %0, %1, %cst {dimension_numbers = #tpu.dot_dimension_numbers<[1], [0], [0], [1], [0, 0, 1, 1], [], []>} : vector<8x256xbf16>, vector<256x64xbf16>, vector<8x64xf32> -> vector<8x64xf32>
    %c0_3 = arith.constant 0 : index
    %c0_4 = arith.constant 0 : index
    %3 = vector.load %arg3[%c0_3, %c0_4] : memref<1x2560xf32, #tpu.memory_space<vmem>>, vector<1x64xf32>
    %4 = vector.broadcast %3 : vector<1x64xf32> to vector<8x64xf32>
    %5 = arith.addf %2, %4 : vector<8x64xf32>
    %cst_5 = arith.constant dense<0.000000e+00> : vector<8xf32>
    %6 = vector.multi_reduction <add>, %5, %cst_5 [1] : vector<8x64xf32> to vector<8xf32>
    %7 = vector.shape_cast %6 : vector<8xf32> to vector<8x1xf32>
    %cst_6 = arith.constant 6.400000e+01 : f32
    %8 = vector.broadcast %cst_6 : f32 to vector<8x1xf32>
    %9 = arith.divf %7, %8 : vector<8x1xf32>
    %10 = vector.broadcast %9 : vector<8x1xf32> to vector<8x64xf32>
    %11 = arith.subf %5, %10 : vector<8x64xf32>
    %12 = arith.mulf %11, %11 : vector<8x64xf32>
    %cst_7 = arith.constant dense<0.000000e+00> : vector<8xf32>
    %13 = vector.multi_reduction <add>, %12, %cst_7 [1] : vector<8x64xf32> to vector<8xf32>
    %14 = vector.shape_cast %13 : vector<8xf32> to vector<8x1xf32>
    %cst_8 = arith.constant 6.400000e+01 : f32
    %15 = vector.broadcast %cst_8 : f32 to vector<8x1xf32>
    %16 = arith.divf %14, %15 : vector<8x1xf32>
    %17 = vector.broadcast %9 : vector<8x1xf32> to vector<8x64xf32>
    %18 = arith.subf %5, %17 : vector<8x64xf32>
    %cst_9 = arith.constant 9.99999974E-6 : f32
    %19 = vector.broadcast %cst_9 : f32 to vector<8x1xf32>
    %20 = arith.addf %16, %19 : vector<8x1xf32>
    %21 = math.rsqrt %20 : vector<8x1xf32>
    %22 = vector.broadcast %21 : vector<8x1xf32> to vector<8x64xf32>
    %23 = arith.mulf %18, %22 : vector<8x64xf32>
    %cst_10 = arith.constant 1.000000e+00 : f32
    %24 = vector.broadcast %cst_10 : f32 to vector<8x64xf32>
    %25 = arith.mulf %23, %24 : vector<8x64xf32>
    %cst_11 = arith.constant 0.000000e+00 : f32
    %26 = vector.broadcast %cst_11 : f32 to vector<8x64xf32>
    %27 = arith.addf %25, %26 : vector<8x64xf32>
    %c0_12 = arith.constant 0 : index
    %c0_13 = arith.constant 0 : index
    %28 = vector.load %arg1[%c0_12, %c0_13] : memref<8x170xbf16, #tpu.memory_space<vmem>>, vector<8x170xbf16>
    %c0_14 = arith.constant 0 : index
    %c0_15 = arith.constant 0 : index
    %29 = vector.load %arg5[%c0_14, %c0_15] : memref<170x128xbf16, #tpu.memory_space<vmem>>, vector<170x128xbf16>
    %cst_16 = arith.constant dense<0.000000e+00> : vector<8x128xf32>
    %30 = tpu.matmul %28, %29, %cst_16 {dimension_numbers = #tpu.dot_dimension_numbers<[1], [0], [0], [1], [0, 0, 1, 1], [], []>} : vector<8x170xbf16>, vector<170x128xbf16>, vector<8x128xf32> -> vector<8x128xf32>
    %c0_17 = arith.constant 0 : index
    %c0_18 = arith.constant 0 : index
    %31 = vector.load %arg6[%c0_17, %c0_18] : memref<64x128xbf16, #tpu.memory_space<vmem>>, vector<64x128xbf16>
    %32 = arith.truncf %27 : vector<8x64xf32> to vector<8x64xbf16>
    %cst_19 = arith.constant dense<0.000000e+00> : vector<8x128xf32>
    %33 = tpu.matmul %32, %31, %cst_19 {dimension_numbers = #tpu.dot_dimension_numbers<[1], [0], [0], [1], [0, 0, 1, 1], [], []>} : vector<8x64xbf16>, vector<64x128xbf16>, vector<8x128xf32> -> vector<8x128xf32>
    %34 = arith.addf %30, %33 : vector<8x128xf32>
    %c0_20 = arith.constant 0 : index
    %c128 = arith.constant 128 : index
    %35 = vector.load %arg3[%c0_20, %c128] : memref<1x2560xf32, #tpu.memory_space<vmem>>, vector<1x128xf32>
    %36 = vector.broadcast %35 : vector<1x128xf32> to vector<8x128xf32>
    %37 = arith.addf %34, %36 : vector<8x128xf32>
    %c0_21 = arith.constant 0 : index
    %c256 = arith.constant 256 : index
    %38 = vector.load %arg3[%c0_21, %c256] : memref<1x2560xf32, #tpu.memory_space<vmem>>, vector<1x128xf32>
    %c0_22 = arith.constant 0 : index
    %c384 = arith.constant 384 : index
    %39 = vector.load %arg3[%c0_22, %c384] : memref<1x2560xf32, #tpu.memory_space<vmem>>, vector<1x128xf32>
    %c0_23 = arith.constant 0 : index
    %c0_24 = arith.constant 0 : index
    %40 = vector.load %arg7[%c0_23, %c0_24] : memref<128x256xbf16, #tpu.memory_space<vmem>>, vector<128x256xbf16>
    %c0_25 = arith.constant 0 : index
    %c512 = arith.constant 512 : index
    %41 = vector.load %arg3[%c0_25, %c512] : memref<1x2560xf32, #tpu.memory_space<vmem>>, vector<1x256xf32>
    %c0_26 = arith.constant 0 : index
    %c0_27 = arith.constant 0 : index
    %42 = vector.load %arg8[%c0_26, %c0_27] : memref<256x128xbf16, #tpu.memory_space<vmem>>, vector<256x128xbf16>
    %c0_28 = arith.constant 0 : index
    %c768 = arith.constant 768 : index
    %43 = vector.load %arg3[%c0_28, %c768] : memref<1x2560xf32, #tpu.memory_space<vmem>>, vector<1x128xf32>
    %cst_29 = arith.constant dense<0.000000e+00> : vector<8xf32>
    %44 = vector.multi_reduction <add>, %37, %cst_29 [1] : vector<8x128xf32> to vector<8xf32>
    %45 = vector.shape_cast %44 : vector<8xf32> to vector<8x1xf32>
    %cst_30 = arith.constant 1.280000e+02 : f32
    %46 = vector.broadcast %cst_30 : f32 to vector<8x1xf32>
    %47 = arith.divf %45, %46 : vector<8x1xf32>
    %48 = vector.broadcast %47 : vector<8x1xf32> to vector<8x128xf32>
    %49 = arith.subf %37, %48 : vector<8x128xf32>
    %50 = arith.mulf %49, %49 : vector<8x128xf32>
    %cst_31 = arith.constant dense<0.000000e+00> : vector<8xf32>
    %51 = vector.multi_reduction <add>, %50, %cst_31 [1] : vector<8x128xf32> to vector<8xf32>
    %52 = vector.shape_cast %51 : vector<8xf32> to vector<8x1xf32>
    %cst_32 = arith.constant 1.280000e+02 : f32
    %53 = vector.broadcast %cst_32 : f32 to vector<8x1xf32>
    %54 = arith.divf %52, %53 : vector<8x1xf32>
    %55 = vector.broadcast %47 : vector<8x1xf32> to vector<8x128xf32>
    %56 = arith.subf %37, %55 : vector<8x128xf32>
    %cst_33 = arith.constant 9.99999974E-6 : f32
    %57 = vector.broadcast %cst_33 : f32 to vector<8x1xf32>
    %58 = arith.addf %54, %57 : vector<8x1xf32>
    %59 = math.rsqrt %58 : vector<8x1xf32>
    %60 = vector.broadcast %59 : vector<8x1xf32> to vector<8x128xf32>
    %61 = arith.mulf %56, %60 : vector<8x128xf32>
    %62 = vector.broadcast %38 : vector<1x128xf32> to vector<8x128xf32>
    %63 = arith.mulf %61, %62 : vector<8x128xf32>
    %64 = vector.broadcast %39 : vector<1x128xf32> to vector<8x128xf32>
    %65 = arith.addf %63, %64 : vector<8x128xf32>
    %66 = arith.truncf %65 : vector<8x128xf32> to vector<8x128xbf16>
    %cst_34 = arith.constant dense<0.000000e+00> : vector<8x256xf32>
    %67 = tpu.matmul %66, %40, %cst_34 {dimension_numbers = #tpu.dot_dimension_numbers<[1], [0], [0], [1], [0, 0, 1, 1], [], []>} : vector<8x128xbf16>, vector<128x256xbf16>, vector<8x256xf32> -> vector<8x256xf32>
    %68 = vector.broadcast %41 : vector<1x256xf32> to vector<8x256xf32>
    %69 = arith.addf %67, %68 : vector<8x256xf32>
    %cst_35 = arith.constant 0.000000e+00 : f32
    %70 = vector.broadcast %cst_35 : f32 to vector<8x256xf32>
    %71 = arith.cmpf ogt, %69, %70 : vector<8x256xf32>
    %cst_36 = arith.constant 0.000000e+00 : f32
    %72 = vector.broadcast %cst_36 : f32 to vector<8x256xf32>
    %73 = arith.minimumf %69, %72 : vector<8x256xf32>
    %74 = math.exp %73 : vector<8x256xf32>
    %cst_37 = arith.constant 1.000000e+00 : f32
    %75 = vector.broadcast %cst_37 : f32 to vector<8x256xf32>
    %76 = arith.subf %74, %75 : vector<8x256xf32>
    %77 = arith.select %71, %69, %76 : vector<8x256xi1>, vector<8x256xf32>
    %78 = arith.truncf %77 : vector<8x256xf32> to vector<8x256xbf16>
    %cst_38 = arith.constant dense<0.000000e+00> : vector<8x128xf32>
    %79 = tpu.matmul %78, %42, %cst_38 {dimension_numbers = #tpu.dot_dimension_numbers<[1], [0], [0], [1], [0, 0, 1, 1], [], []>} : vector<8x256xbf16>, vector<256x128xbf16>, vector<8x128xf32> -> vector<8x128xf32>
    %80 = vector.broadcast %43 : vector<1x128xf32> to vector<8x128xf32>
    %81 = arith.addf %79, %80 : vector<8x128xf32>
    %cst_39 = arith.constant 0.000000e+00 : f32
    %82 = vector.broadcast %cst_39 : f32 to vector<8x128xf32>
    %83 = arith.cmpf ogt, %81, %82 : vector<8x128xf32>
    %cst_40 = arith.constant 0.000000e+00 : f32
    %84 = vector.broadcast %cst_40 : f32 to vector<8x128xf32>
    %85 = arith.minimumf %81, %84 : vector<8x128xf32>
    %86 = math.exp %85 : vector<8x128xf32>
    %cst_41 = arith.constant 1.000000e+00 : f32
    %87 = vector.broadcast %cst_41 : f32 to vector<8x128xf32>
    %88 = arith.subf %86, %87 : vector<8x128xf32>
    %89 = arith.select %83, %81, %88 : vector<8x128xi1>, vector<8x128xf32>
    %cst_42 = arith.constant dense<0.000000e+00> : vector<8xf32>
    %90 = vector.multi_reduction <add>, %89, %cst_42 [1] : vector<8x128xf32> to vector<8xf32>
    %91 = vector.shape_cast %90 : vector<8xf32> to vector<8x1xf32>
    %cst_43 = arith.constant 1.280000e+02 : f32
    %92 = vector.broadcast %cst_43 : f32 to vector<8x1xf32>
    %93 = arith.divf %91, %92 : vector<8x1xf32>
    %94 = vector.broadcast %93 : vector<8x1xf32> to vector<8x128xf32>
    %95 = arith.subf %89, %94 : vector<8x128xf32>
    %96 = arith.mulf %95, %95 : vector<8x128xf32>
    %cst_44 = arith.constant dense<0.000000e+00> : vector<8xf32>
    %97 = vector.multi_reduction <add>, %96, %cst_44 [1] : vector<8x128xf32> to vector<8xf32>
    %98 = vector.shape_cast %97 : vector<8xf32> to vector<8x1xf32>
    %cst_45 = arith.constant 1.280000e+02 : f32
    %99 = vector.broadcast %cst_45 : f32 to vector<8x1xf32>
    %100 = arith.divf %98, %99 : vector<8x1xf32>
    %101 = vector.broadcast %93 : vector<8x1xf32> to vector<8x128xf32>
    %102 = arith.subf %89, %101 : vector<8x128xf32>
    %cst_46 = arith.constant 9.99999974E-6 : f32
    %103 = vector.broadcast %cst_46 : f32 to vector<8x1xf32>
    %104 = arith.addf %100, %103 : vector<8x1xf32>
    %105 = math.rsqrt %104 : vector<8x1xf32>
    %106 = vector.broadcast %105 : vector<8x1xf32> to vector<8x128xf32>
    %107 = arith.mulf %102, %106 : vector<8x128xf32>
    %108 = vector.broadcast %38 : vector<1x128xf32> to vector<8x128xf32>
    %109 = arith.mulf %107, %108 : vector<8x128xf32>
    %110 = vector.broadcast %39 : vector<1x128xf32> to vector<8x128xf32>
    %111 = arith.addf %109, %110 : vector<8x128xf32>
    %c0_47 = arith.constant 0 : index
    %c896 = arith.constant 896 : index
    %112 = vector.load %arg3[%c0_47, %c896] : memref<1x2560xf32, #tpu.memory_space<vmem>>, vector<1x128xf32>
    %c0_48 = arith.constant 0 : index
    %c1024 = arith.constant 1024 : index
    %113 = vector.load %arg3[%c0_48, %c1024] : memref<1x2560xf32, #tpu.memory_space<vmem>>, vector<1x128xf32>
    %c0_49 = arith.constant 0 : index
    %c0_50 = arith.constant 0 : index
    %114 = vector.load %arg9[%c0_49, %c0_50] : memref<128x256xbf16, #tpu.memory_space<vmem>>, vector<128x256xbf16>
    %c0_51 = arith.constant 0 : index
    %c1152 = arith.constant 1152 : index
    %115 = vector.load %arg3[%c0_51, %c1152] : memref<1x2560xf32, #tpu.memory_space<vmem>>, vector<1x256xf32>
    %c0_52 = arith.constant 0 : index
    %c0_53 = arith.constant 0 : index
    %116 = vector.load %arg10[%c0_52, %c0_53] : memref<256x128xbf16, #tpu.memory_space<vmem>>, vector<256x128xbf16>
    %c0_54 = arith.constant 0 : index
    %c1408 = arith.constant 1408 : index
    %117 = vector.load %arg3[%c0_54, %c1408] : memref<1x2560xf32, #tpu.memory_space<vmem>>, vector<1x128xf32>
    %cst_55 = arith.constant dense<0.000000e+00> : vector<8xf32>
    %118 = vector.multi_reduction <add>, %111, %cst_55 [1] : vector<8x128xf32> to vector<8xf32>
    %119 = vector.shape_cast %118 : vector<8xf32> to vector<8x1xf32>
    %cst_56 = arith.constant 1.280000e+02 : f32
    %120 = vector.broadcast %cst_56 : f32 to vector<8x1xf32>
    %121 = arith.divf %119, %120 : vector<8x1xf32>
    %122 = vector.broadcast %121 : vector<8x1xf32> to vector<8x128xf32>
    %123 = arith.subf %111, %122 : vector<8x128xf32>
    %124 = arith.mulf %123, %123 : vector<8x128xf32>
    %cst_57 = arith.constant dense<0.000000e+00> : vector<8xf32>
    %125 = vector.multi_reduction <add>, %124, %cst_57 [1] : vector<8x128xf32> to vector<8xf32>
    %126 = vector.shape_cast %125 : vector<8xf32> to vector<8x1xf32>
    %cst_58 = arith.constant 1.280000e+02 : f32
    %127 = vector.broadcast %cst_58 : f32 to vector<8x1xf32>
    %128 = arith.divf %126, %127 : vector<8x1xf32>
    %129 = vector.broadcast %121 : vector<8x1xf32> to vector<8x128xf32>
    %130 = arith.subf %111, %129 : vector<8x128xf32>
    %cst_59 = arith.constant 9.99999974E-6 : f32
    %131 = vector.broadcast %cst_59 : f32 to vector<8x1xf32>
    %132 = arith.addf %128, %131 : vector<8x1xf32>
    %133 = math.rsqrt %132 : vector<8x1xf32>
    %134 = vector.broadcast %133 : vector<8x1xf32> to vector<8x128xf32>
    %135 = arith.mulf %130, %134 : vector<8x128xf32>
    %136 = vector.broadcast %112 : vector<1x128xf32> to vector<8x128xf32>
    %137 = arith.mulf %135, %136 : vector<8x128xf32>
    %138 = vector.broadcast %113 : vector<1x128xf32> to vector<8x128xf32>
    %139 = arith.addf %137, %138 : vector<8x128xf32>
    %140 = arith.truncf %139 : vector<8x128xf32> to vector<8x128xbf16>
    %cst_60 = arith.constant dense<0.000000e+00> : vector<8x256xf32>
    %141 = tpu.matmul %140, %114, %cst_60 {dimension_numbers = #tpu.dot_dimension_numbers<[1], [0], [0], [1], [0, 0, 1, 1], [], []>} : vector<8x128xbf16>, vector<128x256xbf16>, vector<8x256xf32> -> vector<8x256xf32>
    %142 = vector.broadcast %115 : vector<1x256xf32> to vector<8x256xf32>
    %143 = arith.addf %141, %142 : vector<8x256xf32>
    %cst_61 = arith.constant 0.000000e+00 : f32
    %144 = vector.broadcast %cst_61 : f32 to vector<8x256xf32>
    %145 = arith.cmpf ogt, %143, %144 : vector<8x256xf32>
    %cst_62 = arith.constant 0.000000e+00 : f32
    %146 = vector.broadcast %cst_62 : f32 to vector<8x256xf32>
    %147 = arith.minimumf %143, %146 : vector<8x256xf32>
    %148 = math.exp %147 : vector<8x256xf32>
    %cst_63 = arith.constant 1.000000e+00 : f32
    %149 = vector.broadcast %cst_63 : f32 to vector<8x256xf32>
    %150 = arith.subf %148, %149 : vector<8x256xf32>
    %151 = arith.select %145, %143, %150 : vector<8x256xi1>, vector<8x256xf32>
    %152 = arith.truncf %151 : vector<8x256xf32> to vector<8x256xbf16>
    %cst_64 = arith.constant dense<0.000000e+00> : vector<8x128xf32>
    %153 = tpu.matmul %152, %116, %cst_64 {dimension_numbers = #tpu.dot_dimension_numbers<[1], [0], [0], [1], [0, 0, 1, 1], [], []>} : vector<8x256xbf16>, vector<256x128xbf16>, vector<8x128xf32> -> vector<8x128xf32>
    %154 = vector.broadcast %117 : vector<1x128xf32> to vector<8x128xf32>
    %155 = arith.addf %153, %154 : vector<8x128xf32>
    %cst_65 = arith.constant 0.000000e+00 : f32
    %156 = vector.broadcast %cst_65 : f32 to vector<8x128xf32>
    %157 = arith.cmpf ogt, %155, %156 : vector<8x128xf32>
    %cst_66 = arith.constant 0.000000e+00 : f32
    %158 = vector.broadcast %cst_66 : f32 to vector<8x128xf32>
    %159 = arith.minimumf %155, %158 : vector<8x128xf32>
    %160 = math.exp %159 : vector<8x128xf32>
    %cst_67 = arith.constant 1.000000e+00 : f32
    %161 = vector.broadcast %cst_67 : f32 to vector<8x128xf32>
    %162 = arith.subf %160, %161 : vector<8x128xf32>
    %163 = arith.select %157, %155, %162 : vector<8x128xi1>, vector<8x128xf32>
    %cst_68 = arith.constant dense<0.000000e+00> : vector<8xf32>
    %164 = vector.multi_reduction <add>, %163, %cst_68 [1] : vector<8x128xf32> to vector<8xf32>
    %165 = vector.shape_cast %164 : vector<8xf32> to vector<8x1xf32>
    %cst_69 = arith.constant 1.280000e+02 : f32
    %166 = vector.broadcast %cst_69 : f32 to vector<8x1xf32>
    %167 = arith.divf %165, %166 : vector<8x1xf32>
    %168 = vector.broadcast %167 : vector<8x1xf32> to vector<8x128xf32>
    %169 = arith.subf %163, %168 : vector<8x128xf32>
    %170 = arith.mulf %169, %169 : vector<8x128xf32>
    %cst_70 = arith.constant dense<0.000000e+00> : vector<8xf32>
    %171 = vector.multi_reduction <add>, %170, %cst_70 [1] : vector<8x128xf32> to vector<8xf32>
    %172 = vector.shape_cast %171 : vector<8xf32> to vector<8x1xf32>
    %cst_71 = arith.constant 1.280000e+02 : f32
    %173 = vector.broadcast %cst_71 : f32 to vector<8x1xf32>
    %174 = arith.divf %172, %173 : vector<8x1xf32>
    %175 = vector.broadcast %167 : vector<8x1xf32> to vector<8x128xf32>
    %176 = arith.subf %163, %175 : vector<8x128xf32>
    %cst_72 = arith.constant 9.99999974E-6 : f32
    %177 = vector.broadcast %cst_72 : f32 to vector<8x1xf32>
    %178 = arith.addf %174, %177 : vector<8x1xf32>
    %179 = math.rsqrt %178 : vector<8x1xf32>
    %180 = vector.broadcast %179 : vector<8x1xf32> to vector<8x128xf32>
    %181 = arith.mulf %176, %180 : vector<8x128xf32>
    %182 = vector.broadcast %112 : vector<1x128xf32> to vector<8x128xf32>
    %183 = arith.mulf %181, %182 : vector<8x128xf32>
    %184 = vector.broadcast %113 : vector<1x128xf32> to vector<8x128xf32>
    %185 = arith.addf %183, %184 : vector<8x128xf32>
    %c0_73 = arith.constant 0 : index
    %c0_74 = arith.constant 0 : index
    %186 = vector.load %arg11[%c0_73, %c0_74] : memref<128x256xbf16, #tpu.memory_space<vmem>>, vector<128x256xbf16>
    %187 = arith.truncf %185 : vector<8x128xf32> to vector<8x128xbf16>
    %cst_75 = arith.constant dense<0.000000e+00> : vector<8x256xf32>
    %188 = tpu.matmul %187, %186, %cst_75 {dimension_numbers = #tpu.dot_dimension_numbers<[1], [0], [0], [1], [0, 0, 1, 1], [], []>} : vector<8x128xbf16>, vector<128x256xbf16>, vector<8x256xf32> -> vector<8x256xf32>
    %c0_76 = arith.constant 0 : index
    %c1536 = arith.constant 1536 : index
    %189 = vector.load %arg3[%c0_76, %c1536] : memref<1x2560xf32, #tpu.memory_space<vmem>>, vector<1x256xf32>
    %190 = vector.broadcast %189 : vector<1x256xf32> to vector<8x256xf32>
    %191 = arith.addf %188, %190 : vector<8x256xf32>
    %c0_77 = arith.constant 0 : index
    %c0_78 = arith.constant 0 : index
    %192 = vector.load %arg12[%c0_77, %c0_78] : memref<256x512xbf16, #tpu.memory_space<vmem>>, vector<256x512xbf16>
    %193 = arith.truncf %191 : vector<8x256xf32> to vector<8x256xbf16>
    %cst_79 = arith.constant dense<0.000000e+00> : vector<8x512xf32>
    %194 = tpu.matmul %193, %192, %cst_79 {dimension_numbers = #tpu.dot_dimension_numbers<[1], [0], [0], [1], [0, 0, 1, 1], [], []>} : vector<8x256xbf16>, vector<256x512xbf16>, vector<8x512xf32> -> vector<8x512xf32>
    %c0_80 = arith.constant 0 : index
    %c1792 = arith.constant 1792 : index
    %195 = vector.load %arg3[%c0_80, %c1792] : memref<1x2560xf32, #tpu.memory_space<vmem>>, vector<1x512xf32>
    %196 = vector.broadcast %195 : vector<1x512xf32> to vector<8x512xf32>
    %197 = arith.addf %194, %196 : vector<8x512xf32>
    %cst_81 = arith.constant 0.000000e+00 : f32
    %198 = vector.broadcast %cst_81 : f32 to vector<8x512xf32>
    %199 = arith.maximumf %197, %198 : vector<8x512xf32>
    %c0_82 = arith.constant 0 : index
    %c0_83 = arith.constant 0 : index
    %200 = vector.load %arg13[%c0_82, %c0_83] : memref<512x64xbf16, #tpu.memory_space<vmem>>, vector<512x64xbf16>
    %201 = arith.truncf %199 : vector<8x512xf32> to vector<8x512xbf16>
    %cst_84 = arith.constant dense<0.000000e+00> : vector<8x64xf32>
    %202 = tpu.matmul %201, %200, %cst_84 {dimension_numbers = #tpu.dot_dimension_numbers<[1], [0], [0], [1], [0, 0, 1, 1], [], []>} : vector<8x512xbf16>, vector<512x64xbf16>, vector<8x64xf32> -> vector<8x64xf32>
    %c0_85 = arith.constant 0 : index
    %c2304 = arith.constant 2304 : index
    %203 = vector.load %arg3[%c0_85, %c2304] : memref<1x2560xf32, #tpu.memory_space<vmem>>, vector<1x64xf32>
    %204 = vector.broadcast %203 : vector<1x64xf32> to vector<8x64xf32>
    %205 = arith.addf %202, %204 : vector<8x64xf32>
    %c0_86 = arith.constant 0 : index
    %c0_87 = arith.constant 0 : index
    %206 = vector.load %arg14[%c0_86, %c0_87] : memref<64x128xbf16, #tpu.memory_space<vmem>>, vector<64x128xbf16>
    %207 = arith.truncf %205 : vector<8x64xf32> to vector<8x64xbf16>
    %cst_88 = arith.constant dense<0.000000e+00> : vector<8x128xf32>
    %208 = tpu.matmul %207, %206, %cst_88 {dimension_numbers = #tpu.dot_dimension_numbers<[1], [0], [0], [1], [0, 0, 1, 1], [], []>} : vector<8x64xbf16>, vector<64x128xbf16>, vector<8x128xf32> -> vector<8x128xf32>
    %c0_89 = arith.constant 0 : index
    %c2432 = arith.constant 2432 : index
    %209 = vector.load %arg3[%c0_89, %c2432] : memref<1x2560xf32, #tpu.memory_space<vmem>>, vector<1x128xf32>
    %210 = vector.broadcast %209 : vector<1x128xf32> to vector<8x128xf32>
    %211 = arith.addf %208, %210 : vector<8x128xf32>
    %c0_90 = arith.constant 0 : index
    %c0_91 = arith.constant 0 : index
    %212 = vector.load %arg15[%c0_90, %c0_91] : memref<8x128xf32, #tpu.memory_space<vmem>>, vector<8x128xf32>
    tpu.vector_store %arg15[%c0_90, %c0_91], %211 {strides = array<i32>} : memref<8x128xf32, #tpu.memory_space<vmem>>, vector<8x128xf32>,
    return
  }
  func.func @transform_0(%arg0: i32) -> (i32, i32) {
    %c0_i32 = arith.constant 0 : i32
    %c0_i32_0 = arith.constant 0 : i32
    return %arg0, %c0_i32 : i32, i32
  }
  func.func @transform_1(%arg0: i32) -> (i32, i32) {
    %c0_i32 = arith.constant 0 : i32
    %c0_i32_0 = arith.constant 0 : i32
    return %arg0, %c0_i32 : i32, i32
  }
  func.func @transform_2(%arg0: i32) -> (i32, i32) {
    %c0_i32 = arith.constant 0 : i32
    %c0_i32_0 = arith.constant 0 : i32
    %c0_i32_1 = arith.constant 0 : i32
    return %c0_i32, %c0_i32_0 : i32, i32
  }
  func.func @transform_3(%arg0: i32) -> (i32, i32) {
    %c0_i32 = arith.constant 0 : i32
    %c0_i32_0 = arith.constant 0 : i32
    %c0_i32_1 = arith.constant 0 : i32
    return %c0_i32, %c0_i32_0 : i32, i32
  }
  func.func @transform_4(%arg0: i32) -> (i32, i32) {
    %c0_i32 = arith.constant 0 : i32
    %c0_i32_0 = arith.constant 0 : i32
    %c0_i32_1 = arith.constant 0 : i32
    return %c0_i32, %c0_i32_0 : i32, i32
  }
  func.func @transform_5(%arg0: i32) -> (i32, i32) {
    %c0_i32 = arith.constant 0 : i32
    %c0_i32_0 = arith.constant 0 : i32
    %c0_i32_1 = arith.constant 0 : i32
    return %c0_i32, %c0_i32_0 : i32, i32
  }
  func.func @transform_6(%arg0: i32) -> (i32, i32) {
    %c0_i32 = arith.constant 0 : i32
    %c0_i32_0 = arith.constant 0 : i32
    %c0_i32_1 = arith.constant 0 : i32
    return %c0_i32, %c0_i32_0 : i32, i32
  }
  func.func @transform_7(%arg0: i32) -> (i32, i32) {
    %c0_i32 = arith.constant 0 : i32
    %c0_i32_0 = arith.constant 0 : i32
    %c0_i32_1 = arith.constant 0 : i32
    return %c0_i32, %c0_i32_0 : i32, i32
  }
  func.func @transform_8(%arg0: i32) -> (i32, i32) {
    %c0_i32 = arith.constant 0 : i32
    %c0_i32_0 = arith.constant 0 : i32
    %c0_i32_1 = arith.constant 0 : i32
    return %c0_i32, %c0_i32_0 : i32, i32
  }
  func.func @transform_9(%arg0: i32) -> (i32, i32) {
    %c0_i32 = arith.constant 0 : i32
    %c0_i32_0 = arith.constant 0 : i32
    %c0_i32_1 = arith.constant 0 : i32
    return %c0_i32, %c0_i32_0 : i32, i32
  }
  func.func @transform_10(%arg0: i32) -> (i32, i32) {
    %c0_i32 = arith.constant 0 : i32
    %c0_i32_0 = arith.constant 0 : i32
    %c0_i32_1 = arith.constant 0 : i32
    return %c0_i32, %c0_i32_0 : i32, i32
  }
  func.func @transform_11(%arg0: i32) -> (i32, i32) {
    %c0_i32 = arith.constant 0 : i32
    %c0_i32_0 = arith.constant 0 : i32
    %c0_i32_1 = arith.constant 0 : i32
    return %c0_i32, %c0_i32_0 : i32, i32
  }
  func.func @transform_12(%arg0: i32) -> (i32, i32) {
    %c0_i32 = arith.constant 0 : i32
    %c0_i32_0 = arith.constant 0 : i32
    %c0_i32_1 = arith.constant 0 : i32
    return %c0_i32, %c0_i32_0 : i32, i32
  }
  func.func @transform_13(%arg0: i32) -> (i32, i32) {
    %c0_i32 = arith.constant 0 : i32
    %c0_i32_0 = arith.constant 0 : i32
    %c0_i32_1 = arith.constant 0 : i32
    return %c0_i32, %c0_i32_0 : i32, i32
  }
  func.func @transform_14(%arg0: i32) -> (i32, i32) {
    %c0_i32 = arith.constant 0 : i32
    %c0_i32_0 = arith.constant 0 : i32
    return %arg0, %c0_i32 : i32, i32
  }
}

</mosaic_0001>

<llo_original>
// kernel: critic_forward.1
$region0: #{critic_forward.1}
  #allocation0 [shape = 'u32[]', space=smem, size = 0x4, offset = 0x4, fixed_abs, tag = 'smem constant byte address 0x4 - core index']
  #allocation1 [shape = 'u32[144,128]{1,0:T(1,128)}', space=vmem, size = 0x12000, scoped, tag = 'internal scratch']
  %s0 = inlined_call_operand.vmem [shape: bf16[8,170], index: 0, kind: input, shape index: {}]
  %s1 = inlined_call_operand.vmem [shape: bf16[8,256], index: 1, kind: input, shape index: {}]
  %s2 = inlined_call_operand.vmem [shape: f32[1,2560], index: 2, kind: input, shape index: {}]
  %s3 = inlined_call_operand.vmem [shape: bf16[256,64], index: 3, kind: input, shape index: {}]
  %s4 = inlined_call_operand.vmem [shape: bf16[170,128], index: 4, kind: input, shape index: {}]
  %s5 = inlined_call_operand.vmem [shape: bf16[64,128], index: 5, kind: input, shape index: {}]
  %s6 = inlined_call_operand.vmem [shape: bf16[128,256], index: 6, kind: input, shape index: {}]
  %s7 = inlined_call_operand.vmem [shape: bf16[256,128], index: 7, kind: input, shape index: {}]
  %s8 = inlined_call_operand.vmem [shape: bf16[128,256], index: 8, kind: input, shape index: {}]
  %s9 = inlined_call_operand.vmem [shape: bf16[256,128], index: 9, kind: input, shape index: {}]
  %s10 = inlined_call_operand.vmem [shape: bf16[128,256], index: 10, kind: input, shape index: {}]
  %s11 = inlined_call_operand.vmem [shape: bf16[256,512], index: 11, kind: input, shape index: {}]
  %s12 = inlined_call_operand.vmem [shape: bf16[512,64], index: 12, kind: input, shape index: {}]
  %s13 = inlined_call_operand.hbm [shape: bf16[64,128], index: 13, kind: input, shape index: {}]
  %s14 = inlined_call_operand.vmem [shape: f32[8,128], index: 14, kind: output, shape index: {}]
  %s15 = sld [smem:[#allocation0]]
  $region70: #{critic_forward.1} parent=0
    _
  %s17 = ssub.s32 1, %s15
  %s18 = scalar_select 0, %s17, %s15
  $region1: #{critic_forward.1} parent=0
    #allocation2 [shape = 'u8[16384]{0}', space=vmem, size = 0x4000, scoped, tag = 'input window, operand 13, single buffered']
    #allocation3 [shape = 's32[1]{0}', space=sflag, size = 0x4, scoped, tag = 'scoped memory for critic_forward.1']
    %19 = vsyncpa [#allocation3], 0
    // Predicated region
    $region2: #{critic_forward.1} parent=1 // pred_check
      _
    $region3: #{critic_forward.1} parent=1 // pred_check_branch
      %21 = sbr.rel (0) target = $region5
    $region4: #{critic_forward.1} parent=1 // pred_region
      _
    $region5: #{critic_forward.1} parent=1 // pred_fallthru
      _
    // Predicated region
    $region6: #{critic_forward.1} parent=1 // pred_check
      _
    $region7: #{critic_forward.1} parent=1 // pred_check_branch
      %23 = sbr.rel (0) target = $region9
    $region8: #{critic_forward.1} parent=1 // pred_region
      _
    $region9: #{critic_forward.1} parent=1 // pred_fallthru
      _
    // Predicated region
    $region10: #{critic_forward.1} parent=1 // pred_check
      _
    $region11: #{critic_forward.1} parent=1 // pred_check_branch
      %25 = sbr.rel (0) target = $region13
    $region12: #{critic_forward.1} parent=1 // pred_region
      _
    $region13: #{critic_forward.1} parent=1 // pred_fallthru
      _
    // Predicated region
    $region14: #{critic_forward.1} parent=1 // pred_check
      _
    $region15: #{critic_forward.1} parent=1 // pred_check_branch
      %27 = sbr.rel (0) target = $region17
    $region16: #{critic_forward.1} parent=1 // pred_region
      _
    $region17: #{critic_forward.1} parent=1 // pred_fallthru
      _
    // Predicated region
    $region18: #{critic_forward.1} parent=1 // pred_check
      _
    $region19: #{critic_forward.1} parent=1 // pred_check_branch
      %29 = sbr.rel (0) target = $region21
    $region20: #{critic_forward.1} parent=1 // pred_region
      _
    $region21: #{critic_forward.1} parent=1 // pred_fallthru
      _
    // Predicated region
    $region22: #{critic_forward.1} parent=1 // pred_check
      _
    $region23: #{critic_forward.1} parent=1 // pred_check_branch
      %31 = sbr.rel (0) target = $region25
    $region24: #{critic_forward.1} parent=1 // pred_region
      _
    $region25: #{critic_forward.1} parent=1 // pred_fallthru
      _
    // Predicated region
    $region26: #{critic_forward.1} parent=1 // pred_check
      _
    $region27: #{critic_forward.1} parent=1 // pred_check_branch
      %33 = sbr.rel (0) target = $region29
    $region28: #{critic_forward.1} parent=1 // pred_region
      _
    $region29: #{critic_forward.1} parent=1 // pred_fallthru
      _
    // Predicated region
    $region30: #{critic_forward.1} parent=1 // pred_check
      _
    $region31: #{critic_forward.1} parent=1 // pred_check_branch
      %35 = sbr.rel (0) target = $region33
    $region32: #{critic_forward.1} parent=1 // pred_region
      _
    $region33: #{critic_forward.1} parent=1 // pred_fallthru
      _
    // Predicated region
    $region34: #{critic_forward.1} parent=1 // pred_check
      _
    $region35: #{critic_forward.1} parent=1 // pred_check_branch
      %37 = sbr.rel (0) target = $region37
    $region36: #{critic_forward.1} parent=1 // pred_region
      _
    $region37: #{critic_forward.1} parent=1 // pred_fallthru
      _
    // Predicated region
    $region38: #{critic_forward.1} parent=1 // pred_check
      _
    $region39: #{critic_forward.1} parent=1 // pred_check_branch
      %39 = sbr.rel (0) target = $region41
    $region40: #{critic_forward.1} parent=1 // pred_region
      _
    $region41: #{critic_forward.1} parent=1 // pred_fallthru
      _
    // Predicated region
    $region42: #{critic_forward.1} parent=1 // pred_check
      _
    $region43: #{critic_forward.1} parent=1 // pred_check_branch
      %41 = sbr.rel (0) target = $region45
    $region44: #{critic_forward.1} parent=1 // pred_region
      _
    $region45: #{critic_forward.1} parent=1 // pred_fallthru
      _
    // Predicated region
    $region46: #{critic_forward.1} parent=1 // pred_check
      _
    $region47: #{critic_forward.1} parent=1 // pred_check_branch
      %43 = sbr.rel (0) target = $region49
    $region48: #{critic_forward.1} parent=1 // pred_region
      _
    $region49: #{critic_forward.1} parent=1 // pred_fallthru
      _
    // Predicated region
    $region50: #{critic_forward.1} parent=1 // pred_check
      _
    $region51: #{critic_forward.1} parent=1 // pred_check_branch
      %45 = sbr.rel (0) target = $region53
    $region52: #{critic_forward.1} parent=1 // pred_region
      _
    $region53: #{critic_forward.1} parent=1 // pred_fallthru
      _
    // Predicated region
    $region54: #{critic_forward.1} parent=1 // pred_check
      _
    $region55: #{critic_forward.1} parent=1 // pred_check_branch
      %47 = sbr.rel (0) target = $region57
    $region56: #{critic_forward.1} parent=1 // pred_region
      %s49 = ssub.s32 512, 512
      %50 = vsyncadd [#allocation3], %s49
      %s51 = sshll.u32 [#allocation2], 4
      %s52 = int_to_ptr.vmem [resolvable:$true] %s51
      %57 = dma.hbm_to_vmem [thread:$0]  %s13, 512, %s52, [#allocation3], 64, 64, 4
    $region57: #{critic_forward.1} parent=1 // pred_fallthru
      _
    // Predicated region
    $region58: #{critic_forward.1} parent=1 // pred_check
      _
    $region59: #{critic_forward.1} parent=1 // pred_check_branch
      %59 = sbr.rel (0) target = $region61
    $region60: #{critic_forward.1} parent=1 // pred_region
      %60 = dma.done [#allocation3], 512
    $region61: #{critic_forward.1} parent=1 // pred_fallthru
      _
    %v62 = vld [vmem:[%s1] sm:$0xff]
    %v63 = vld [vmem:[%s3] sm:$0xf]
    %v64 = vld [vmem:[%s3 + $0x4] sm:$0xf]
    %v65 = vld [vmem:[%s3 + $0x8] sm:$0xf]
    %v66 = vld [vmem:[%s3 + $0xc] sm:$0xf]
    %v67 = vld [vmem:[%s3 + $0x10] sm:$0xf]
    %v68 = vld [vmem:[%s3 + $0x14] sm:$0xf]
    %v69 = vld [vmem:[%s3 + $0x18] sm:$0xf]
    %v70 = vld [vmem:[%s3 + $0x1c] sm:$0xf]
    %v71 = vld [vmem:[%s3 + $0x20] sm:$0xf]
    %v72 = vld [vmem:[%s3 + $0x24] sm:$0xf]
    %v73 = vld [vmem:[%s3 + $0x28] sm:$0xf]
    %v74 = vld [vmem:[%s3 + $0x2c] sm:$0xf]
    %v75 = vld [vmem:[%s3 + $0x30] sm:$0xf]
    %v76 = vld [vmem:[%s3 + $0x34] sm:$0xf]
    %v77 = vld [vmem:[%s3 + $0x38] sm:$0xf]
    %v78 = vld [vmem:[%s3 + $0x3c] sm:$0xf]
    %v79 = vld [vmem:[%s3 + $0x40] sm:$0xf]
    %v80 = vld [vmem:[%s3 + $0x44] sm:$0xf]
    %v81 = vld [vmem:[%s3 + $0x48] sm:$0xf]
    %v82 = vld [vmem:[%s3 + $0x4c] sm:$0xf]
    %v83 = vld [vmem:[%s3 + $0x50] sm:$0xf]
    %v84 = vld [vmem:[%s3 + $0x54] sm:$0xf]
    %v85 = vld [vmem:[%s3 + $0x58] sm:$0xf]
    %v86 = vld [vmem:[%s3 + $0x5c] sm:$0xf]
    %v87 = vld [vmem:[%s3 + $0x60] sm:$0xf]
    %v88 = vld [vmem:[%s3 + $0x64] sm:$0xf]
    %v89 = vld [vmem:[%s3 + $0x68] sm:$0xf]
    %v90 = vld [vmem:[%s3 + $0x6c] sm:$0xf]
    %v91 = vld [vmem:[%s3 + $0x70] sm:$0xf]
    %v92 = vld [vmem:[%s3 + $0x74] sm:$0xf]
    %v93 = vld [vmem:[%s3 + $0x78] sm:$0xf]
    %v94 = vld [vmem:[%s3 + $0x7c] sm:$0xf]
    %v95 = vld [vmem:[%s2] sm:$0x1]
    %v97 = vlaneseq
    %v98 = vshrl.u32 %v97, 7
    %v99 = vsub.s32 0, %v98
    %v100 = vrot.slane %v95, %v99
    %v103 = vunpack.c.l.b16 %v62
    %v104 = vunpack.c.h.b16 %v62
    %v105 = vpack.c.b16 %v103, %v103
    %v106 = vpack.c.b16 %v104, %v104
    %v141 = vunpack.c.l.b16 %v63
    %v142 = vunpack.c.l.b16 %v64
    %v143 = vunpack.c.l.b16 %v65
    %v144 = vunpack.c.l.b16 %v66
    %v145 = vunpack.c.l.b16 %v67
    %v146 = vunpack.c.l.b16 %v68
    %v147 = vunpack.c.l.b16 %v69
    %v148 = vunpack.c.l.b16 %v70
    %v149 = vunpack.c.l.b16 %v71
    %v150 = vunpack.c.l.b16 %v72
    %v151 = vunpack.c.l.b16 %v73
    %v152 = vunpack.c.l.b16 %v74
    %v153 = vunpack.c.l.b16 %v75
    %v154 = vunpack.c.l.b16 %v76
    %v155 = vunpack.c.l.b16 %v77
    %v156 = vunpack.c.l.b16 %v78
    %v157 = vunpack.c.l.b16 %v79
    %v158 = vunpack.c.l.b16 %v80
    %v159 = vunpack.c.l.b16 %v81
    %v160 = vunpack.c.l.b16 %v82
    %v161 = vunpack.c.l.b16 %v83
    %v162 = vunpack.c.l.b16 %v84
    %v163 = vunpack.c.l.b16 %v85
    %v164 = vunpack.c.l.b16 %v86
    %v165 = vunpack.c.l.b16 %v87
    %v166 = vunpack.c.l.b16 %v88
    %v167 = vunpack.c.l.b16 %v89
    %v168 = vunpack.c.l.b16 %v90
    %v169 = vunpack.c.l.b16 %v91
    %v170 = vunpack.c.l.b16 %v92
    %v171 = vunpack.c.l.b16 %v93
    %v172 = vunpack.c.l.b16 %v94
    %v173 = vpack.c.b16 %v142, %v141
    %v174 = vpack.c.b16 %v144, %v143
    %v175 = vpack.c.b16 %v146, %v145
    %v176 = vpack.c.b16 %v148, %v147
    %v177 = vpack.c.b16 %v150, %v149
    %v178 = vpack.c.b16 %v152, %v151
    %v179 = vpack.c.b16 %v154, %v153
    %v180 = vpack.c.b16 %v156, %v155
    %v181 = vpack.c.b16 %v158, %v157
    %v182 = vpack.c.b16 %v160, %v159
    %v183 = vpack.c.b16 %v162, %v161
    %v184 = vpack.c.b16 %v164, %v163
    %v185 = vpack.c.b16 %v166, %v165
    %v186 = vpack.c.b16 %v168, %v167
    %v187 = vpack.c.b16 %v170, %v169
    %v188 = vpack.c.b16 %v172, %v171
    %205 = vmatprep.subr.bf16.mxu0 0
    %206 = vmatpush1.bf16.msra.mxu0 %v180
    %207 = vmatprep.subr.bf16.mxu0 0
    %208 = vmatpush1.bf16.msra.mxu0 %v179
    %209 = vmatprep.subr.bf16.mxu0 0
    %210 = vmatpush1.bf16.msra.mxu0 %v178
    %211 = vmatprep.subr.bf16.mxu0 0
    %212 = vmatpush1.bf16.msra.mxu0 %v177
    %213 = vmatprep.subr.bf16.mxu0 0
    %214 = vmatpush1.bf16.msra.mxu0 %v176
    %215 = vmatprep.subr.bf16.mxu0 0
    %216 = vmatpush1.bf16.msra.mxu0 %v175
    %217 = vmatprep.subr.bf16.mxu0 0
    %218 = vmatpush1.bf16.msra.mxu0 %v174
    %219 = vmatprep.subr.bf16.mxu0 0
    %220 = vmatpush1.bf16.msra.mxu0 %v173
    %221 = vmatprep.subr.bf16.mxu0 0
    %222 = vmatpush2.bf16.msra.mxu0 %v188
    %223 = vmatprep.subr.bf16.mxu0 0
    %224 = vmatpush2.bf16.msra.mxu0 %v187
    %225 = vmatprep.subr.bf16.mxu0 0
    %226 = vmatpush2.bf16.msra.mxu0 %v186
    %227 = vmatprep.subr.bf16.mxu0 0
    %228 = vmatpush2.bf16.msra.mxu0 %v185
    %229 = vmatprep.subr.bf16.mxu0 0
    %230 = vmatpush2.bf16.msra.mxu0 %v184
    %231 = vmatprep.subr.bf16.mxu0 0
    %232 = vmatpush2.bf16.msra.mxu0 %v183
    %233 = vmatprep.subr.bf16.mxu0 0
    %234 = vmatpush2.bf16.msra.mxu0 %v182
    %235 = vmatprep.subr.bf16.mxu0 0
    %236 = vmatpush2.bf16.msra.mxu0 %v181
    %237 = vmatprep.mubr.bf16.mxu0 %v106
    %238 = vmatmul.mubr.bf16.gmra.mxu0 %v105
    %v239 = vpop.f32.mrf.mxu0
    %v240 = vadd.f32 %v100, %v239
    %v241 = vpop.f32.mrf.mxu0
    %v242 = vpop.f32.mrf.mxu0
    %v243 = vpop.f32.mrf.mxu0
    %244 = vdwg.mxu0
    %vm245 = vcmask 523264
    %v246 = vsel %vm245, %v240, 0.0
    %247 = vadd.xlane.f32.xlu0 %v246
    %v248 = vpop.xlane.xlu0 %247
    %v249 = vrcp.pop 64.0
    %v250 = vmul.f32 %v248, %v249
    %v251 = vsub.f32 %v240, %v250
    %v252 = vmul.f32 %v251, %v251
    %v253 = vsel %vm245, %v252, 0.0
    %254 = vadd.xlane.f32.xlu0 %v253
    %v255 = vpop.xlane.xlu0 %254
    %v256 = vmul.f32 %v255, %v249
    %v257 = vadd.f32 %v256, 1e-05
    %v258 = vrsqrt.pop %v257
    %v259 = vmul.f32 %v251, %v258
    %v260 = vadd.f32 %v259, 0.0
    %v261 = vld [vmem:[%s0] sm:$0xff]
    %v262 = vld [vmem:[%s4] sm:$0xf]
    %v263 = vld [vmem:[%s4 + $0x4] sm:$0xf]
    %v264 = vld [vmem:[%s4 + $0x8] sm:$0xf]
    %v265 = vld [vmem:[%s4 + $0xc] sm:$0xf]
    %v266 = vld [vmem:[%s4 + $0x10] sm:$0xf]
    %v267 = vld [vmem:[%s4 + $0x14] sm:$0xf]
    %v268 = vld [vmem:[%s4 + $0x18] sm:$0xf]
    %v269 = vld [vmem:[%s4 + $0x1c] sm:$0xf]
    %v270 = vld [vmem:[%s4 + $0x20] sm:$0xf]
    %v271 = vld [vmem:[%s4 + $0x24] sm:$0xf]
    %v272 = vld [vmem:[%s4 + $0x28] sm:$0xf]
    %v273 = vld [vmem:[%s4 + $0x2c] sm:$0xf]
    %v274 = vld [vmem:[%s4 + $0x30] sm:$0xf]
    %v275 = vld [vmem:[%s4 + $0x34] sm:$0xf]
    %v276 = vld [vmem:[%s4 + $0x38] sm:$0xf]
    %v277 = vld [vmem:[%s4 + $0x3c] sm:$0xf]
    %v278 = vld [vmem:[%s4 + $0x40] sm:$0xf]
    %v279 = vld [vmem:[%s4 + $0x44] sm:$0xf]
    %v280 = vld [vmem:[%s4 + $0x48] sm:$0xf]
    %v281 = vld [vmem:[%s4 + $0x4c] sm:$0xf]
    %v282 = vld [vmem:[%s4 + $0x50] sm:$0xf]
    %v283 = vld [vmem:[%s4 + $0x54] sm:$0x1]
    %v284 = vld [vmem:[%s5] sm:$0xf]
    %v285 = vld [vmem:[%s5 + $0x4] sm:$0xf]
    %v286 = vld [vmem:[%s5 + $0x8] sm:$0xf]
    %v287 = vld [vmem:[%s5 + $0xc] sm:$0xf]
    %v288 = vld [vmem:[%s5 + $0x10] sm:$0xf]
    %v289 = vld [vmem:[%s5 + $0x14] sm:$0xf]
    %v290 = vld [vmem:[%s5 + $0x18] sm:$0xf]
    %v291 = vld [vmem:[%s5 + $0x1c] sm:$0xf]
    %v292 = vpack.c.bf16 %v260, %v260
    %v301 = vunpack.c.l.b16 %v284
    %v302 = vunpack.c.l.b16 %v285
    %v303 = vunpack.c.l.b16 %v286
    %v304 = vunpack.c.l.b16 %v287
    %v305 = vunpack.c.l.b16 %v288
    %v306 = vunpack.c.l.b16 %v289
    %v307 = vunpack.c.l.b16 %v290
    %v308 = vunpack.c.l.b16 %v291
    %v309 = vpack.c.b16 %v302, %v301
    %v310 = vpack.c.b16 %v304, %v303
    %v311 = vpack.c.b16 %v306, %v305
    %v312 = vpack.c.b16 %v308, %v307
    %v318 = vsel %vm245, %v292, 0
    %320 = vmatprep.subr.bf16.mxu0 0
    %321 = vmatpush1.bf16.msra.mxu0 0
    %322 = vmatprep.subr.bf16.mxu0 0
    %323 = vmatpush1.bf16.msra.mxu0 0
    %324 = vmatprep.subr.bf16.mxu0 0
    %325 = vmatpush1.bf16.msra.mxu0 0
    %326 = vmatprep.subr.bf16.mxu0 0
    %327 = vmatpush1.bf16.msra.mxu0 0
    %328 = vmatprep.subr.bf16.mxu0 0
    %329 = vmatpush1.bf16.msra.mxu0 %v312
    %330 = vmatprep.subr.bf16.mxu0 0
    %331 = vmatpush1.bf16.msra.mxu0 %v311
    %332 = vmatprep.subr.bf16.mxu0 0
    %333 = vmatpush1.bf16.msra.mxu0 %v310
    %334 = vmatprep.subr.bf16.mxu0 0
    %335 = vmatpush1.bf16.msra.mxu0 %v309
    %336 = vmatprep.subr.bf16.mxu0 0
    %337 = vmatpush2.bf16.msra.mxu0 0
    %338 = vmatprep.subr.bf16.mxu0 0
    %339 = vmatpush2.bf16.msra.mxu0 0
    %340 = vmatprep.subr.bf16.mxu0 0
    %341 = vmatpush2.bf16.msra.mxu0 0
    %342 = vmatprep.subr.bf16.mxu0 0
    %343 = vmatpush2.bf16.msra.mxu0 0
    %344 = vmatprep.subr.bf16.mxu0 0
    %345 = vmatpush2.bf16.msra.mxu0 0
    %346 = vmatprep.subr.bf16.mxu0 0
    %347 = vmatpush2.bf16.msra.mxu0 0
    %348 = vmatprep.subr.bf16.mxu0 0
    %349 = vmatpush2.bf16.msra.mxu0 0
    %350 = vmatprep.subr.bf16.mxu0 0
    %351 = vmatpush2.bf16.msra.mxu0 0
    %352 = vmatprep.mubr.bf16.mxu0 0
    %353 = vmatmul.mubr.bf16.gmra.mxu0 %v318
    %v354 = vpop.f32.mrf.mxu0
    %v355 = vadd.f32 0.0, %v354
    %v356 = vpop.f32.mrf.mxu0
    %v357 = vpop.f32.mrf.mxu0
    %v358 = vpop.f32.mrf.mxu0
    %359 = vdwg.mxu0
    %v361 = vunpack.c.l.b16 %v261
    %v362 = vunpack.c.h.b16 %v261
    %v363 = vpack.c.b16 %v361, %v361
    %v364 = vpack.c.b16 %v362, %v362
    %v388 = vunpack.c.l.b16 %v262
    %v389 = vunpack.c.l.b16 %v263
    %v390 = vunpack.c.l.b16 %v264
    %v391 = vunpack.c.l.b16 %v265
    %v392 = vunpack.c.l.b16 %v266
    %v393 = vunpack.c.l.b16 %v267
    %v394 = vunpack.c.l.b16 %v268
    %v395 = vunpack.c.l.b16 %v269
    %v396 = vunpack.c.l.b16 %v270
    %v397 = vunpack.c.l.b16 %v271
    %v398 = vunpack.c.l.b16 %v272
    %v399 = vunpack.c.l.b16 %v273
    %v400 = vunpack.c.l.b16 %v274
    %v401 = vunpack.c.l.b16 %v275
    %v402 = vunpack.c.l.b16 %v276
    %v403 = vunpack.c.l.b16 %v277
    %v404 = vunpack.c.l.b16 %v278
    %v405 = vunpack.c.l.b16 %v279
    %v406 = vunpack.c.l.b16 %v280
    %v407 = vunpack.c.l.b16 %v281
    %v408 = vunpack.c.l.b16 %v282
    %v409 = vunpack.c.l.b16 %v283
    %v410 = vpack.c.b16 %v389, %v388
    %v411 = vpack.c.b16 %v391, %v390
    %v412 = vpack.c.b16 %v393, %v392
    %v413 = vpack.c.b16 %v395, %v394
    %v414 = vpack.c.b16 %v397, %v396
    %v415 = vpack.c.b16 %v399, %v398
    %v416 = vpack.c.b16 %v401, %v400
    %v417 = vpack.c.b16 %v403, %v402
    %v418 = vpack.c.b16 %v405, %v404
    %v419 = vpack.c.b16 %v407, %v406
    %v420 = vpack.c.b16 %v409, %v408
    %vm431 = vcmask 343040
    %v433 = vsel %vm431, %v364, 0
    %vm435 = vcmask 1044480
    %v437 = vsel %vm435, %v420, 0
    %439 = vmatprep.subr.bf16.mxu0 0
    %440 = vmatpush1.bf16.msra.mxu0 %v417
    %441 = vmatprep.subr.bf16.mxu0 0
    %442 = vmatpush1.bf16.msra.mxu0 %v416
    %443 = vmatprep.subr.bf16.mxu0 0
    %444 = vmatpush1.bf16.msra.mxu0 %v415
    %445 = vmatprep.subr.bf16.mxu0 0
    %446 = vmatpush1.bf16.msra.mxu0 %v414
    %447 = vmatprep.subr.bf16.mxu0 0
    %448 = vmatpush1.bf16.msra.mxu0 %v413
    %449 = vmatprep.subr.bf16.mxu0 0
    %450 = vmatpush1.bf16.msra.mxu0 %v412
    %451 = vmatprep.subr.bf16.mxu0 0
    %452 = vmatpush1.bf16.msra.mxu0 %v411
    %453 = vmatprep.subr.bf16.mxu0 0
    %454 = vmatpush1.bf16.msra.mxu0 %v410
    %455 = vmatprep.subr.bf16.mxu0 0
    %456 = vmatpush2.bf16.msra.mxu0 0
    %457 = vmatprep.subr.bf16.mxu0 0
    %458 = vmatpush2.bf16.msra.mxu0 0
    %459 = vmatprep.subr.bf16.mxu0 0
    %460 = vmatpush2.bf16.msra.mxu0 0
    %461 = vmatprep.subr.bf16.mxu0 0
    %462 = vmatpush2.bf16.msra.mxu0 0
    %463 = vmatprep.subr.bf16.mxu0 0
    %464 = vmatpush2.bf16.msra.mxu0 0
    %465 = vmatprep.subr.bf16.mxu0 0
    %466 = vmatpush2.bf16.msra.mxu0 %v437
    %467 = vmatprep.subr.bf16.mxu0 0
    %468 = vmatpush2.bf16.msra.mxu0 %v419
    %469 = vmatprep.subr.bf16.mxu0 0
    %470 = vmatpush2.bf16.msra.mxu0 %v418
    %471 = vmatprep.mubr.bf16.mxu0 %v433
    %472 = vmatmul.mubr.bf16.gmra.mxu0 %v363
    %v473 = vpop.f32.mrf.mxu0
    %v474 = vadd.f32 %v355, %v473
    %v475 = vpop.f32.mrf.mxu0
    %v476 = vpop.f32.mrf.mxu0
    %v477 = vpop.f32.mrf.mxu0
    %478 = vdwg.mxu0
    %v479 = vld [vmem:[%s2 + $0x1] sm:$0x1]
    %v481 = vlaneseq
    %v482 = vshrl.u32 %v481, 7
    %v483 = vsub.s32 0, %v482
    %v484 = vrot.slane %v479, %v483
    %v486 = vadd.f32 %v474, %v484
    %v487 = vld [vmem:[%s2 + $0x2] sm:$0x1]
    %v488 = vld [vmem:[%s2 + $0x3] sm:$0x1]
    %v489 = vld [vmem:[%s6] sm:$0xff]
    %v490 = vld [vmem:[%s6 + $0x8] sm:$0xff]
    %v491 = vld [vmem:[%s6 + $0x10] sm:$0xff]
    %v492 = vld [vmem:[%s6 + $0x18] sm:$0xff]
    %v493 = vld [vmem:[%s6 + $0x20] sm:$0xff]
    %v494 = vld [vmem:[%s6 + $0x28] sm:$0xff]
    %v495 = vld [vmem:[%s6 + $0x30] sm:$0xff]
    %v496 = vld [vmem:[%s6 + $0x38] sm:$0xff]
    %v497 = vld [vmem:[%s6 + $0x40] sm:$0xff]
    %v498 = vld [vmem:[%s6 + $0x48] sm:$0xff]
    %v499 = vld [vmem:[%s6 + $0x50] sm:$0xff]
    %v500 = vld [vmem:[%s6 + $0x58] sm:$0xff]
    %v501 = vld [vmem:[%s6 + $0x60] sm:$0xff]
    %v502 = vld [vmem:[%s6 + $0x68] sm:$0xff]
    %v503 = vld [vmem:[%s6 + $0x70] sm:$0xff]
    %v504 = vld [vmem:[%s6 + $0x78] sm:$0xff]
    %v505 = vld [vmem:[%s2 + $0x4] sm:$0x3]
    %v506 = vld [vmem:[%s7] sm:$0xf]
    %v507 = vld [vmem:[%s7 + $0x4] sm:$0xf]
    %v508 = vld [vmem:[%s7 + $0x8] sm:$0xf]
    %v509 = vld [vmem:[%s7 + $0xc] sm:$0xf]
    %v510 = vld [vmem:[%s7 + $0x10] sm:$0xf]
    %v511 = vld [vmem:[%s7 + $0x14] sm:$0xf]
    %v512 = vld [vmem:[%s7 + $0x18] sm:$0xf]
    %v513 = vld [vmem:[%s7 + $0x1c] sm:$0xf]
    %v514 = vld [vmem:[%s7 + $0x20] sm:$0xf]
    %v515 = vld [vmem:[%s7 + $0x24] sm:$0xf]
    %v516 = vld [vmem:[%s7 + $0x28] sm:$0xf]
    %v517 = vld [vmem:[%s7 + $0x2c] sm:$0xf]
    %v518 = vld [vmem:[%s7 + $0x30] sm:$0xf]
    %v519 = vld [vmem:[%s7 + $0x34] sm:$0xf]
    %v520 = vld [vmem:[%s7 + $0x38] sm:$0xf]
    %v521 = vld [vmem:[%s7 + $0x3c] sm:$0xf]
    %v522 = vld [vmem:[%s7 + $0x40] sm:$0xf]
    %v523 = vld [vmem:[%s7 + $0x44] sm:$0xf]
    %v524 = vld [vmem:[%s7 + $0x48] sm:$0xf]
    %v525 = vld [vmem:[%s7 + $0x4c] sm:$0xf]
    %v526 = vld [vmem:[%s7 + $0x50] sm:$0xf]
    %v527 = vld [vmem:[%s7 + $0x54] sm:$0xf]
    %v528 = vld [vmem:[%s7 + $0x58] sm:$0xf]
    %v529 = vld [vmem:[%s7 + $0x5c] sm:$0xf]
    %v530 = vld [vmem:[%s7 + $0x60] sm:$0xf]
    %v531 = vld [vmem:[%s7 + $0x64] sm:$0xf]
    %v532 = vld [vmem:[%s7 + $0x68] sm:$0xf]
    %v533 = vld [vmem:[%s7 + $0x6c] sm:$0xf]
    %v534 = vld [vmem:[%s7 + $0x70] sm:$0xf]
    %v535 = vld [vmem:[%s7 + $0x74] sm:$0xf]
    %v536 = vld [vmem:[%s7 + $0x78] sm:$0xf]
    %v537 = vld [vmem:[%s7 + $0x7c] sm:$0xf]
    %v538 = vld [vmem:[%s2 + $0x6] sm:$0x1]
    %539 = vadd.xlane.f32.xlu0 %v486
    %v540 = vpop.xlane.xlu0 %539
    %v541 = vrcp.pop 128.0
    %v542 = vmul.f32 %v540, %v541
    %v543 = vsub.f32 %v486, %v542
    %v544 = vmul.f32 %v543, %v543
    %545 = vadd.xlane.f32.xlu0 %v544
    %v546 = vpop.xlane.xlu0 %545
    %v547 = vmul.f32 %v546, %v541
    %v548 = vadd.f32 %v547, 1e-05
    %v549 = vrsqrt.pop %v548
    %v550 = vmul.f32 %v543, %v549
    %v552 = vlaneseq
    %v553 = vshrl.u32 %v552, 7
    %v554 = vsub.s32 0, %v553
    %v555 = vrot.slane %v487, %v554
    %v557 = vmul.f32 %v550, %v555
    %v559 = vlaneseq
    %v560 = vshrl.u32 %v559, 7
    %v561 = vsub.s32 0, %v560
    %v562 = vrot.slane %v488, %v561
    %v564 = vadd.f32 %v557, %v562
    %v565 = vpack.c.bf16 %v564, %v564
    %v567 = vlaneseq
    %v568 = vshrl.u32 %v567, 7
    %v569 = vsub.s32 0, %v568
    %v570 = vrot.slane %v505, %v569
    %v571 = vlaneseq
    %v572 = vshrl.u32 %v571, 7
    %v573 = vsub.s32 1, %v572
    %v574 = vrot.slane %v505, %v573
    %v593 = vunpack.c.l.b16 %v489
    %v594 = vunpack.c.h.b16 %v489
    %v595 = vunpack.c.l.b16 %v490
    %v596 = vunpack.c.h.b16 %v490
    %v597 = vunpack.c.l.b16 %v491
    %v598 = vunpack.c.h.b16 %v491
    %v599 = vunpack.c.l.b16 %v492
    %v600 = vunpack.c.h.b16 %v492
    %v601 = vunpack.c.l.b16 %v493
    %v602 = vunpack.c.h.b16 %v493
    %v603 = vunpack.c.l.b16 %v494
    %v604 = vunpack.c.h.b16 %v494
    %v605 = vunpack.c.l.b16 %v495
    %v606 = vunpack.c.h.b16 %v495
    %v607 = vunpack.c.l.b16 %v496
    %v608 = vunpack.c.h.b16 %v496
    %v609 = vunpack.c.l.b16 %v497
    %v610 = vunpack.c.h.b16 %v497
    %v611 = vunpack.c.l.b16 %v498
    %v612 = vunpack.c.h.b16 %v498
    %v613 = vunpack.c.l.b16 %v499
    %v614 = vunpack.c.h.b16 %v499
    %v615 = vunpack.c.l.b16 %v500
    %v616 = vunpack.c.h.b16 %v500
    %v617 = vunpack.c.l.b16 %v501
    %v618 = vunpack.c.h.b16 %v501
    %v619 = vunpack.c.l.b16 %v502
    %v620 = vunpack.c.h.b16 %v502
    %v621 = vunpack.c.l.b16 %v503
    %v622 = vunpack.c.h.b16 %v503
    %v623 = vunpack.c.l.b16 %v504
    %v624 = vunpack.c.h.b16 %v504
    %v625 = vpack.c.b16 %v595, %v593
    %v626 = vpack.c.b16 %v596, %v594
    %v627 = vpack.c.b16 %v599, %v597
    %v628 = vpack.c.b16 %v600, %v598
    %v629 = vpack.c.b16 %v603, %v601
    %v630 = vpack.c.b16 %v604, %v602
    %v631 = vpack.c.b16 %v607, %v605
    %v632 = vpack.c.b16 %v608, %v606
    %v633 = vpack.c.b16 %v611, %v609
    %v634 = vpack.c.b16 %v612, %v610
    %v635 = vpack.c.b16 %v615, %v613
    %v636 = vpack.c.b16 %v616, %v614
    %v637 = vpack.c.b16 %v619, %v617
    %v638 = vpack.c.b16 %v620, %v618
    %v639 = vpack.c.b16 %v623, %v621
    %v640 = vpack.c.b16 %v624, %v622
    %657 = vmatprep.subr.bf16.mxu0 %v640
    %658 = vmatpush1.bf16.msra.mxu0 %v639
    %659 = vmatprep.subr.bf16.mxu0 %v638
    %660 = vmatpush1.bf16.msra.mxu0 %v637
    %661 = vmatprep.subr.bf16.mxu0 %v636
    %662 = vmatpush1.bf16.msra.mxu0 %v635
    %663 = vmatprep.subr.bf16.mxu0 %v634
    %664 = vmatpush1.bf16.msra.mxu0 %v633
    %665 = vmatprep.subr.bf16.mxu0 %v632
    %666 = vmatpush1.bf16.msra.mxu0 %v631
    %667 = vmatprep.subr.bf16.mxu0 %v630
    %668 = vmatpush1.bf16.msra.mxu0 %v629
    %669 = vmatprep.subr.bf16.mxu0 %v628
    %670 = vmatpush1.bf16.msra.mxu0 %v627
    %671 = vmatprep.subr.bf16.mxu0 %v626
    %672 = vmatpush1.bf16.msra.mxu0 %v625
    %673 = vmatprep.subr.bf16.mxu0 0
    %674 = vmatpush2.bf16.msra.mxu0 0
    %675 = vmatprep.subr.bf16.mxu0 0
    %676 = vmatpush2.bf16.msra.mxu0 0
    %677 = vmatprep.subr.bf16.mxu0 0
    %678 = vmatpush2.bf16.msra.mxu0 0
    %679 = vmatprep.subr.bf16.mxu0 0
    %680 = vmatpush2.bf16.msra.mxu0 0
    %681 = vmatprep.subr.bf16.mxu0 0
    %682 = vmatpush2.bf16.msra.mxu0 0
    %683 = vmatprep.subr.bf16.mxu0 0
    %684 = vmatpush2.bf16.msra.mxu0 0
    %685 = vmatprep.subr.bf16.mxu0 0
    %686 = vmatpush2.bf16.msra.mxu0 0
    %687 = vmatprep.subr.bf16.mxu0 0
    %688 = vmatpush2.bf16.msra.mxu0 0
    %689 = vmatprep.mubr.bf16.mxu0 0
    %690 = vmatmul.mubr.bf16.gmra.mxu0 %v565
    %v691 = vpop.f32.mrf.mxu0
    %v692 = vadd.f32 %v570, %v691
    %v693 = vpop.f32.mrf.mxu0
    %v694 = vadd.f32 %v574, %v693
    %v695 = vpop.f32.mrf.mxu0
    %v696 = vpop.f32.mrf.mxu0
    %697 = vdwg.mxu0
    %vm698 = vcmp.gt.f32.partialorder %v692, 0.0
    %vm699 = vcmp.gt.f32.partialorder %v694, 0.0
    %v700 = vmin.f32 %v692, 0.0
    %v701 = vmin.f32 %v694, 0.0
    %v702 = vmul.f32 %v700, 1.442695
    %v703 = vpow.pop %v702
    %v704 = vmul.f32 %v701, 1.442695
    %v705 = vpow.pop %v704
    %v706 = vsub.f32 %v703, 1.0
    %v707 = vsub.f32 %v705, 1.0
    %v708 = vsel %vm698, %v692, %v706
    %v709 = vsel %vm699, %v694, %v707
    %v710 = vpack.c.bf16 %v708, %v708
    %v711 = vpack.c.bf16 %v709, %v709
    %v713 = vlaneseq
    %v714 = vshrl.u32 %v713, 7
    %v715 = vsub.s32 0, %v714
    %v716 = vrot.slane %v538, %v715
    %v750 = vunpack.c.l.b16 %v506
    %v751 = vunpack.c.l.b16 %v507
    %v752 = vunpack.c.l.b16 %v508
    %v753 = vunpack.c.l.b16 %v509
    %v754 = vunpack.c.l.b16 %v510
    %v755 = vunpack.c.l.b16 %v511
    %v756 = vunpack.c.l.b16 %v512
    %v757 = vunpack.c.l.b16 %v513
    %v758 = vunpack.c.l.b16 %v514
    %v759 = vunpack.c.l.b16 %v515
    %v760 = vunpack.c.l.b16 %v516
    %v761 = vunpack.c.l.b16 %v517
    %v762 = vunpack.c.l.b16 %v518
    %v763 = vunpack.c.l.b16 %v519
    %v764 = vunpack.c.l.b16 %v520
    %v765 = vunpack.c.l.b16 %v521
    %v766 = vunpack.c.l.b16 %v522
    %v767 = vunpack.c.l.b16 %v523
    %v768 = vunpack.c.l.b16 %v524
    %v769 = vunpack.c.l.b16 %v525
    %v770 = vunpack.c.l.b16 %v526
    %v771 = vunpack.c.l.b16 %v527
    %v772 = vunpack.c.l.b16 %v528
    %v773 = vunpack.c.l.b16 %v529
    %v774 = vunpack.c.l.b16 %v530
    %v775 = vunpack.c.l.b16 %v531
    %v776 = vunpack.c.l.b16 %v532
    %v777 = vunpack.c.l.b16 %v533
    %v778 = vunpack.c.l.b16 %v534
    %v779 = vunpack.c.l.b16 %v535
    %v780 = vunpack.c.l.b16 %v536
    %v781 = vunpack.c.l.b16 %v537
    %v782 = vpack.c.b16 %v751, %v750
    %v783 = vpack.c.b16 %v753, %v752
    %v784 = vpack.c.b16 %v755, %v754
    %v785 = vpack.c.b16 %v757, %v756
    %v786 = vpack.c.b16 %v759, %v758
    %v787 = vpack.c.b16 %v761, %v760
    %v788 = vpack.c.b16 %v763, %v762
    %v789 = vpack.c.b16 %v765, %v764
    %v790 = vpack.c.b16 %v767, %v766
    %v791 = vpack.c.b16 %v769, %v768
    %v792 = vpack.c.b16 %v771, %v770
    %v793 = vpack.c.b16 %v773, %v772
    %v794 = vpack.c.b16 %v775, %v774
    %v795 = vpack.c.b16 %v777, %v776
    %v796 = vpack.c.b16 %v779, %v778
    %v797 = vpack.c.b16 %v781, %v780
    %814 = vmatprep.subr.bf16.mxu0 0
    %815 = vmatpush1.bf16.msra.mxu0 %v789
    %816 = vmatprep.subr.bf16.mxu0 0
    %817 = vmatpush1.bf16.msra.mxu0 %v788
    %818 = vmatprep.subr.bf16.mxu0 0
    %819 = vmatpush1.bf16.msra.mxu0 %v787
    %820 = vmatprep.subr.bf16.mxu0 0
    %821 = vmatpush1.bf16.msra.mxu0 %v786
    %822 = vmatprep.subr.bf16.mxu0 0
    %823 = vmatpush1.bf16.msra.mxu0 %v785
    %824 = vmatprep.subr.bf16.mxu0 0
    %825 = vmatpush1.bf16.msra.mxu0 %v784
    %826 = vmatprep.subr.bf16.mxu0 0
    %827 = vmatpush1.bf16.msra.mxu0 %v783
    %828 = vmatprep.subr.bf16.mxu0 0
    %829 = vmatpush1.bf16.msra.mxu0 %v782
    %830 = vmatprep.subr.bf16.mxu0 0
    %831 = vmatpush2.bf16.msra.mxu0 %v797
    %832 = vmatprep.subr.bf16.mxu0 0
    %833 = vmatpush2.bf16.msra.mxu0 %v796
    %834 = vmatprep.subr.bf16.mxu0 0
    %835 = vmatpush2.bf16.msra.mxu0 %v795
    %836 = vmatprep.subr.bf16.mxu0 0
    %837 = vmatpush2.bf16.msra.mxu0 %v794
    %838 = vmatprep.subr.bf16.mxu0 0
    %839 = vmatpush2.bf16.msra.mxu0 %v793
    %840 = vmatprep.subr.bf16.mxu0 0
    %841 = vmatpush2.bf16.msra.mxu0 %v792
    %842 = vmatprep.subr.bf16.mxu0 0
    %843 = vmatpush2.bf16.msra.mxu0 %v791
    %844 = vmatprep.subr.bf16.mxu0 0
    %845 = vmatpush2.bf16.msra.mxu0 %v790
    %846 = vmatprep.mubr.bf16.mxu0 %v711
    %847 = vmatmul.mubr.bf16.gmra.mxu0 %v710
    %v848 = vpop.f32.mrf.mxu0
    %v849 = vadd.f32 %v716, %v848
    %v850 = vpop.f32.mrf.mxu0
    %v851 = vpop.f32.mrf.mxu0
    %v852 = vpop.f32.mrf.mxu0
    %853 = vdwg.mxu0
    %vm854 = vcmp.gt.f32.partialorder %v849, 0.0
    %v855 = vmin.f32 %v849, 0.0
    %v856 = vmul.f32 %v855, 1.442695
    %v857 = vpow.pop %v856
    %v858 = vsub.f32 %v857, 1.0
    %v859 = vsel %vm854, %v849, %v858
    %860 = vadd.xlane.f32.xlu0 %v859
    %v861 = vpop.xlane.xlu0 %860
    %v862 = vmul.f32 %v861, %v541
    %v863 = vsub.f32 %v859, %v862
    %v864 = vmul.f32 %v863, %v863
    %865 = vadd.xlane.f32.xlu0 %v864
    %v866 = vpop.xlane.xlu0 %865
    %v867 = vmul.f32 %v866, %v541
    %v868 = vadd.f32 %v867, 1e-05
    %v869 = vrsqrt.pop %v868
    %v870 = vmul.f32 %v863, %v869
    %v871 = vmul.f32 %v870, %v555
    %v872 = vadd.f32 %v871, %v562
    %v873 = vld [vmem:[%s2 + $0x7] sm:$0x1]
    %v874 = vld [vmem:[%s2 + $0x8] sm:$0x1]
    %v875 = vld [vmem:[%s8] sm:$0xff]
    %v876 = vld [vmem:[%s8 + $0x8] sm:$0xff]
    %v877 = vld [vmem:[%s8 + $0x10] sm:$0xff]
    %v878 = vld [vmem:[%s8 + $0x18] sm:$0xff]
    %v879 = vld [vmem:[%s8 + $0x20] sm:$0xff]
    %v880 = vld [vmem:[%s8 + $0x28] sm:$0xff]
    %v881 = vld [vmem:[%s8 + $0x30] sm:$0xff]
    %v882 = vld [vmem:[%s8 + $0x38] sm:$0xff]
    %v883 = vld [vmem:[%s8 + $0x40] sm:$0xff]
    %v884 = vld [vmem:[%s8 + $0x48] sm:$0xff]
    %v885 = vld [vmem:[%s8 + $0x50] sm:$0xff]
    %v886 = vld [vmem:[%s8 + $0x58] sm:$0xff]
    %v887 = vld [vmem:[%s8 + $0x60] sm:$0xff]
    %v888 = vld [vmem:[%s8 + $0x68] sm:$0xff]
    %v889 = vld [vmem:[%s8 + $0x70] sm:$0xff]
    %v890 = vld [vmem:[%s8 + $0x78] sm:$0xff]
    %v891 = vld [vmem:[%s2 + $0x9] sm:$0x3]
    %v892 = vld [vmem:[%s9] sm:$0xf]
    %v893 = vld [vmem:[%s9 + $0x4] sm:$0xf]
    %v894 = vld [vmem:[%s9 + $0x8] sm:$0xf]
    %v895 = vld [vmem:[%s9 + $0xc] sm:$0xf]
    %v896 = vld [vmem:[%s9 + $0x10] sm:$0xf]
    %v897 = vld [vmem:[%s9 + $0x14] sm:$0xf]
    %v898 = vld [vmem:[%s9 + $0x18] sm:$0xf]
    %v899 = vld [vmem:[%s9 + $0x1c] sm:$0xf]
    %v900 = vld [vmem:[%s9 + $0x20] sm:$0xf]
    %v901 = vld [vmem:[%s9 + $0x24] sm:$0xf]
    %v902 = vld [vmem:[%s9 + $0x28] sm:$0xf]
    %v903 = vld [vmem:[%s9 + $0x2c] sm:$0xf]
    %v904 = vld [vmem:[%s9 + $0x30] sm:$0xf]
    %v905 = vld [vmem:[%s9 + $0x34] sm:$0xf]
    %v906 = vld [vmem:[%s9 + $0x38] sm:$0xf]
    %v907 = vld [vmem:[%s9 + $0x3c] sm:$0xf]
    %v908 = vld [vmem:[%s9 + $0x40] sm:$0xf]
    %v909 = vld [vmem:[%s9 + $0x44] sm:$0xf]
    %v910 = vld [vmem:[%s9 + $0x48] sm:$0xf]
    %v911 = vld [vmem:[%s9 + $0x4c] sm:$0xf]
    %v912 = vld [vmem:[%s9 + $0x50] sm:$0xf]
    %v913 = vld [vmem:[%s9 + $0x54] sm:$0xf]
    %v914 = vld [vmem:[%s9 + $0x58] sm:$0xf]
    %v915 = vld [vmem:[%s9 + $0x5c] sm:$0xf]
    %v916 = vld [vmem:[%s9 + $0x60] sm:$0xf]
    %v917 = vld [vmem:[%s9 + $0x64] sm:$0xf]
    %v918 = vld [vmem:[%s9 + $0x68] sm:$0xf]
    %v919 = vld [vmem:[%s9 + $0x6c] sm:$0xf]
    %v920 = vld [vmem:[%s9 + $0x70] sm:$0xf]
    %v921 = vld [vmem:[%s9 + $0x74] sm:$0xf]
    %v922 = vld [vmem:[%s9 + $0x78] sm:$0xf]
    %v923 = vld [vmem:[%s9 + $0x7c] sm:$0xf]
    %v924 = vld [vmem:[%s2 + $0xb] sm:$0x1]
    %925 = vadd.xlane.f32.xlu0 %v872
    %v926 = vpop.xlane.xlu0 %925
    %v927 = vmul.f32 %v926, %v541
    %v928 = vsub.f32 %v872, %v927
    %v929 = vmul.f32 %v928, %v928
    %930 = vadd.xlane.f32.xlu0 %v929
    %v931 = vpop.xlane.xlu0 %930
    %v932 = vmul.f32 %v931, %v541
    %v933 = vadd.f32 %v932, 1e-05
    %v934 = vrsqrt.pop %v933
    %v935 = vmul.f32 %v928, %v934
    %v937 = vlaneseq
    %v938 = vshrl.u32 %v937, 7
    %v939 = vsub.s32 0, %v938
    %v940 = vrot.slane %v873, %v939
    %v942 = vmul.f32 %v935, %v940
    %v944 = vlaneseq
    %v945 = vshrl.u32 %v944, 7
    %v946 = vsub.s32 0, %v945
    %v947 = vrot.slane %v874, %v946
    %v949 = vadd.f32 %v942, %v947
    %v950 = vpack.c.bf16 %v949, %v949
    %v952 = vlaneseq
    %v953 = vshrl.u32 %v952, 7
    %v954 = vsub.s32 0, %v953
    %v955 = vrot.slane %v891, %v954
    %v956 = vlaneseq
    %v957 = vshrl.u32 %v956, 7
    %v958 = vsub.s32 1, %v957
    %v959 = vrot.slane %v891, %v958
    %v978 = vunpack.c.l.b16 %v875
    %v979 = vunpack.c.h.b16 %v875
    %v980 = vunpack.c.l.b16 %v876
    %v981 = vunpack.c.h.b16 %v876
    %v982 = vunpack.c.l.b16 %v877
    %v983 = vunpack.c.h.b16 %v877
    %v984 = vunpack.c.l.b16 %v878
    %v985 = vunpack.c.h.b16 %v878
    %v986 = vunpack.c.l.b16 %v879
    %v987 = vunpack.c.h.b16 %v879
    %v988 = vunpack.c.l.b16 %v880
    %v989 = vunpack.c.h.b16 %v880
    %v990 = vunpack.c.l.b16 %v881
    %v991 = vunpack.c.h.b16 %v881
    %v992 = vunpack.c.l.b16 %v882
    %v993 = vunpack.c.h.b16 %v882
    %v994 = vunpack.c.l.b16 %v883
    %v995 = vunpack.c.h.b16 %v883
    %v996 = vunpack.c.l.b16 %v884
    %v997 = vunpack.c.h.b16 %v884
    %v998 = vunpack.c.l.b16 %v885
    %v999 = vunpack.c.h.b16 %v885
    %v1000 = vunpack.c.l.b16 %v886
    %v1001 = vunpack.c.h.b16 %v886
    %v1002 = vunpack.c.l.b16 %v887
    %v1003 = vunpack.c.h.b16 %v887
    %v1004 = vunpack.c.l.b16 %v888
    %v1005 = vunpack.c.h.b16 %v888
    %v1006 = vunpack.c.l.b16 %v889
    %v1007 = vunpack.c.h.b16 %v889
    %v1008 = vunpack.c.l.b16 %v890
    %v1009 = vunpack.c.h.b16 %v890
    %v1010 = vpack.c.b16 %v980, %v978
    %v1011 = vpack.c.b16 %v981, %v979
    %v1012 = vpack.c.b16 %v984, %v982
    %v1013 = vpack.c.b16 %v985, %v983
    %v1014 = vpack.c.b16 %v988, %v986
    %v1015 = vpack.c.b16 %v989, %v987
    %v1016 = vpack.c.b16 %v992, %v990
    %v1017 = vpack.c.b16 %v993, %v991
    %v1018 = vpack.c.b16 %v996, %v994
    %v1019 = vpack.c.b16 %v997, %v995
    %v1020 = vpack.c.b16 %v1000, %v998
    %v1021 = vpack.c.b16 %v1001, %v999
    %v1022 = vpack.c.b16 %v1004, %v1002
    %v1023 = vpack.c.b16 %v1005, %v1003
    %v1024 = vpack.c.b16 %v1008, %v1006
    %v1025 = vpack.c.b16 %v1009, %v1007
    %1042 = vmatprep.subr.bf16.mxu0 %v1025
    %1043 = vmatpush1.bf16.msra.mxu0 %v1024
    %1044 = vmatprep.subr.bf16.mxu0 %v1023
    %1045 = vmatpush1.bf16.msra.mxu0 %v1022
    %1046 = vmatprep.subr.bf16.mxu0 %v1021
    %1047 = vmatpush1.bf16.msra.mxu0 %v1020
    %1048 = vmatprep.subr.bf16.mxu0 %v1019
    %1049 = vmatpush1.bf16.msra.mxu0 %v1018
    %1050 = vmatprep.subr.bf16.mxu0 %v1017
    %1051 = vmatpush1.bf16.msra.mxu0 %v1016
    %1052 = vmatprep.subr.bf16.mxu0 %v1015
    %1053 = vmatpush1.bf16.msra.mxu0 %v1014
    %1054 = vmatprep.subr.bf16.mxu0 %v1013
    %1055 = vmatpush1.bf16.msra.mxu0 %v1012
    %1056 = vmatprep.subr.bf16.mxu0 %v1011
    %1057 = vmatpush1.bf16.msra.mxu0 %v1010
    %1058 = vmatprep.subr.bf16.mxu0 0
    %1059 = vmatpush2.bf16.msra.mxu0 0
    %1060 = vmatprep.subr.bf16.mxu0 0
    %1061 = vmatpush2.bf16.msra.mxu0 0
    %1062 = vmatprep.subr.bf16.mxu0 0
    %1063 = vmatpush2.bf16.msra.mxu0 0
    %1064 = vmatprep.subr.bf16.mxu0 0
    %1065 = vmatpush2.bf16.msra.mxu0 0
    %1066 = vmatprep.subr.bf16.mxu0 0
    %1067 = vmatpush2.bf16.msra.mxu0 0
    %1068 = vmatprep.subr.bf16.mxu0 0
    %1069 = vmatpush2.bf16.msra.mxu0 0
    %1070 = vmatprep.subr.bf16.mxu0 0
    %1071 = vmatpush2.bf16.msra.mxu0 0
    %1072 = vmatprep.subr.bf16.mxu0 0
    %1073 = vmatpush2.bf16.msra.mxu0 0
    %1074 = vmatprep.mubr.bf16.mxu0 0
    %1075 = vmatmul.mubr.bf16.gmra.mxu0 %v950
    %v1076 = vpop.f32.mrf.mxu0
    %v1077 = vadd.f32 %v955, %v1076
    %v1078 = vpop.f32.mrf.mxu0
    %v1079 = vadd.f32 %v959, %v1078
    %v1080 = vpop.f32.mrf.mxu0
    %v1081 = vpop.f32.mrf.mxu0
    %1082 = vdwg.mxu0
    %vm1083 = vcmp.gt.f32.partialorder %v1077, 0.0
    %vm1084 = vcmp.gt.f32.partialorder %v1079, 0.0
    %v1085 = vmin.f32 %v1077, 0.0
    %v1086 = vmin.f32 %v1079, 0.0
    %v1087 = vmul.f32 %v1085, 1.442695
    %v1088 = vpow.pop %v1087
    %v1089 = vmul.f32 %v1086, 1.442695
    %v1090 = vpow.pop %v1089
    %v1091 = vsub.f32 %v1088, 1.0
    %v1092 = vsub.f32 %v1090, 1.0
    %v1093 = vsel %vm1083, %v1077, %v1091
    %v1094 = vsel %vm1084, %v1079, %v1092
    %v1095 = vpack.c.bf16 %v1093, %v1093
    %v1096 = vpack.c.bf16 %v1094, %v1094
    %v1098 = vlaneseq
    %v1099 = vshrl.u32 %v1098, 7
    %v1100 = vsub.s32 0, %v1099
    %v1101 = vrot.slane %v924, %v1100
    %v1135 = vunpack.c.l.b16 %v892
    %v1136 = vunpack.c.l.b16 %v893
    %v1137 = vunpack.c.l.b16 %v894
    %v1138 = vunpack.c.l.b16 %v895
    %v1139 = vunpack.c.l.b16 %v896
    %v1140 = vunpack.c.l.b16 %v897
    %v1141 = vunpack.c.l.b16 %v898
    %v1142 = vunpack.c.l.b16 %v899
    %v1143 = vunpack.c.l.b16 %v900
    %v1144 = vunpack.c.l.b16 %v901
    %v1145 = vunpack.c.l.b16 %v902
    %v1146 = vunpack.c.l.b16 %v903
    %v1147 = vunpack.c.l.b16 %v904
    %v1148 = vunpack.c.l.b16 %v905
    %v1149 = vunpack.c.l.b16 %v906
    %v1150 = vunpack.c.l.b16 %v907
    %v1151 = vunpack.c.l.b16 %v908
    %v1152 = vunpack.c.l.b16 %v909
    %v1153 = vunpack.c.l.b16 %v910
    %v1154 = vunpack.c.l.b16 %v911
    %v1155 = vunpack.c.l.b16 %v912
    %v1156 = vunpack.c.l.b16 %v913
    %v1157 = vunpack.c.l.b16 %v914
    %v1158 = vunpack.c.l.b16 %v915
    %v1159 = vunpack.c.l.b16 %v916
    %v1160 = vunpack.c.l.b16 %v917
    %v1161 = vunpack.c.l.b16 %v918
    %v1162 = vunpack.c.l.b16 %v919
    %v1163 = vunpack.c.l.b16 %v920
    %v1164 = vunpack.c.l.b16 %v921
    %v1165 = vunpack.c.l.b16 %v922
    %v1166 = vunpack.c.l.b16 %v923
    %v1167 = vpack.c.b16 %v1136, %v1135
    %v1168 = vpack.c.b16 %v1138, %v1137
    %v1169 = vpack.c.b16 %v1140, %v1139
    %v1170 = vpack.c.b16 %v1142, %v1141
    %v1171 = vpack.c.b16 %v1144, %v1143
    %v1172 = vpack.c.b16 %v1146, %v1145
    %v1173 = vpack.c.b16 %v1148, %v1147
    %v1174 = vpack.c.b16 %v1150, %v1149
    %v1175 = vpack.c.b16 %v1152, %v1151
    %v1176 = vpack.c.b16 %v1154, %v1153
    %v1177 = vpack.c.b16 %v1156, %v1155
    %v1178 = vpack.c.b16 %v1158, %v1157
    %v1179 = vpack.c.b16 %v1160, %v1159
    %v1180 = vpack.c.b16 %v1162, %v1161
    %v1181 = vpack.c.b16 %v1164, %v1163
    %v1182 = vpack.c.b16 %v1166, %v1165
    %1199 = vmatprep.subr.bf16.mxu0 0
    %1200 = vmatpush1.bf16.msra.mxu0 %v1174
    %1201 = vmatprep.subr.bf16.mxu0 0
    %1202 = vmatpush1.bf16.msra.mxu0 %v1173
    %1203 = vmatprep.subr.bf16.mxu0 0
    %1204 = vmatpush1.bf16.msra.mxu0 %v1172
    %1205 = vmatprep.subr.bf16.mxu0 0
    %1206 = vmatpush1.bf16.msra.mxu0 %v1171
    %1207 = vmatprep.subr.bf16.mxu0 0
    %1208 = vmatpush1.bf16.msra.mxu0 %v1170
    %1209 = vmatprep.subr.bf16.mxu0 0
    %1210 = vmatpush1.bf16.msra.mxu0 %v1169
    %1211 = vmatprep.subr.bf16.mxu0 0
    %1212 = vmatpush1.bf16.msra.mxu0 %v1168
    %1213 = vmatprep.subr.bf16.mxu0 0
    %1214 = vmatpush1.bf16.msra.mxu0 %v1167
    %1215 = vmatprep.subr.bf16.mxu0 0
    %1216 = vmatpush2.bf16.msra.mxu0 %v1182
    %1217 = vmatprep.subr.bf16.mxu0 0
    %1218 = vmatpush2.bf16.msra.mxu0 %v1181
    %1219 = vmatprep.subr.bf16.mxu0 0
    %1220 = vmatpush2.bf16.msra.mxu0 %v1180
    %1221 = vmatprep.subr.bf16.mxu0 0
    %1222 = vmatpush2.bf16.msra.mxu0 %v1179
    %1223 = vmatprep.subr.bf16.mxu0 0
    %1224 = vmatpush2.bf16.msra.mxu0 %v1178
    %1225 = vmatprep.subr.bf16.mxu0 0
    %1226 = vmatpush2.bf16.msra.mxu0 %v1177
    %1227 = vmatprep.subr.bf16.mxu0 0
    %1228 = vmatpush2.bf16.msra.mxu0 %v1176
    %1229 = vmatprep.subr.bf16.mxu0 0
    %1230 = vmatpush2.bf16.msra.mxu0 %v1175
    %1231 = vmatprep.mubr.bf16.mxu0 %v1096
    %1232 = vmatmul.mubr.bf16.gmra.mxu0 %v1095
    %v1233 = vpop.f32.mrf.mxu0
    %v1234 = vadd.f32 %v1101, %v1233
    %v1235 = vpop.f32.mrf.mxu0
    %v1236 = vpop.f32.mrf.mxu0
    %v1237 = vpop.f32.mrf.mxu0
    %1238 = vdwg.mxu0
    %vm1239 = vcmp.gt.f32.partialorder %v1234, 0.0
    %v1240 = vmin.f32 %v1234, 0.0
    %v1241 = vmul.f32 %v1240, 1.442695
    %v1242 = vpow.pop %v1241
    %v1243 = vsub.f32 %v1242, 1.0
    %v1244 = vsel %vm1239, %v1234, %v1243
    %1245 = vadd.xlane.f32.xlu0 %v1244
    %v1246 = vpop.xlane.xlu0 %1245
    %v1247 = vmul.f32 %v1246, %v541
    %v1248 = vsub.f32 %v1244, %v1247
    %v1249 = vmul.f32 %v1248, %v1248
    %1250 = vadd.xlane.f32.xlu0 %v1249
    %v1251 = vpop.xlane.xlu0 %1250
    %v1252 = vmul.f32 %v1251, %v541
    %v1253 = vadd.f32 %v1252, 1e-05
    %v1254 = vrsqrt.pop %v1253
    %v1255 = vmul.f32 %v1248, %v1254
    %v1256 = vmul.f32 %v1255, %v940
    %v1257 = vadd.f32 %v1256, %v947
    %v1258 = vld [vmem:[%s10] sm:$0xff]
    %v1259 = vld [vmem:[%s10 + $0x8] sm:$0xff]
    %v1260 = vld [vmem:[%s10 + $0x10] sm:$0xff]
    %v1261 = vld [vmem:[%s10 + $0x18] sm:$0xff]
    %v1262 = vld [vmem:[%s10 + $0x20] sm:$0xff]
    %v1263 = vld [vmem:[%s10 + $0x28] sm:$0xff]
    %v1264 = vld [vmem:[%s10 + $0x30] sm:$0xff]
    %v1265 = vld [vmem:[%s10 + $0x38] sm:$0xff]
    %v1266 = vld [vmem:[%s10 + $0x40] sm:$0xff]
    %v1267 = vld [vmem:[%s10 + $0x48] sm:$0xff]
    %v1268 = vld [vmem:[%s10 + $0x50] sm:$0xff]
    %v1269 = vld [vmem:[%s10 + $0x58] sm:$0xff]
    %v1270 = vld [vmem:[%s10 + $0x60] sm:$0xff]
    %v1271 = vld [vmem:[%s10 + $0x68] sm:$0xff]
    %v1272 = vld [vmem:[%s10 + $0x70] sm:$0xff]
    %v1273 = vld [vmem:[%s10 + $0x78] sm:$0xff]
    %v1274 = vpack.c.bf16 %v1257, %v1257
    %v1275 = vld [vmem:[%s2 + $0xc] sm:$0x3]
    %v1277 = vlaneseq
    %v1278 = vshrl.u32 %v1277, 7
    %v1279 = vsub.s32 0, %v1278
    %v1280 = vrot.slane %v1275, %v1279
    %v1281 = vlaneseq
    %v1282 = vshrl.u32 %v1281, 7
    %v1283 = vsub.s32 1, %v1282
    %v1284 = vrot.slane %v1275, %v1283
    %v1303 = vunpack.c.l.b16 %v1258
    %v1304 = vunpack.c.h.b16 %v1258
    %v1305 = vunpack.c.l.b16 %v1259
    %v1306 = vunpack.c.h.b16 %v1259
    %v1307 = vunpack.c.l.b16 %v1260
    %v1308 = vunpack.c.h.b16 %v1260
    %v1309 = vunpack.c.l.b16 %v1261
    %v1310 = vunpack.c.h.b16 %v1261
    %v1311 = vunpack.c.l.b16 %v1262
    %v1312 = vunpack.c.h.b16 %v1262
    %v1313 = vunpack.c.l.b16 %v1263
    %v1314 = vunpack.c.h.b16 %v1263
    %v1315 = vunpack.c.l.b16 %v1264
    %v1316 = vunpack.c.h.b16 %v1264
    %v1317 = vunpack.c.l.b16 %v1265
    %v1318 = vunpack.c.h.b16 %v1265
    %v1319 = vunpack.c.l.b16 %v1266
    %v1320 = vunpack.c.h.b16 %v1266
    %v1321 = vunpack.c.l.b16 %v1267
    %v1322 = vunpack.c.h.b16 %v1267
    %v1323 = vunpack.c.l.b16 %v1268
    %v1324 = vunpack.c.h.b16 %v1268
    %v1325 = vunpack.c.l.b16 %v1269
    %v1326 = vunpack.c.h.b16 %v1269
    %v1327 = vunpack.c.l.b16 %v1270
    %v1328 = vunpack.c.h.b16 %v1270
    %v1329 = vunpack.c.l.b16 %v1271
    %v1330 = vunpack.c.h.b16 %v1271
    %v1331 = vunpack.c.l.b16 %v1272
    %v1332 = vunpack.c.h.b16 %v1272
    %v1333 = vunpack.c.l.b16 %v1273
    %v1334 = vunpack.c.h.b16 %v1273
    %v1335 = vpack.c.b16 %v1305, %v1303
    %v1336 = vpack.c.b16 %v1306, %v1304
    %v1337 = vpack.c.b16 %v1309, %v1307
    %v1338 = vpack.c.b16 %v1310, %v1308
    %v1339 = vpack.c.b16 %v1313, %v1311
    %v1340 = vpack.c.b16 %v1314, %v1312
    %v1341 = vpack.c.b16 %v1317, %v1315
    %v1342 = vpack.c.b16 %v1318, %v1316
    %v1343 = vpack.c.b16 %v1321, %v1319
    %v1344 = vpack.c.b16 %v1322, %v1320
    %v1345 = vpack.c.b16 %v1325, %v1323
    %v1346 = vpack.c.b16 %v1326, %v1324
    %v1347 = vpack.c.b16 %v1329, %v1327
    %v1348 = vpack.c.b16 %v1330, %v1328
    %v1349 = vpack.c.b16 %v1333, %v1331
    %v1350 = vpack.c.b16 %v1334, %v1332
    %1367 = vmatprep.subr.bf16.mxu0 %v1350
    %1368 = vmatpush1.bf16.msra.mxu0 %v1349
    %1369 = vmatprep.subr.bf16.mxu0 %v1348
    %1370 = vmatpush1.bf16.msra.mxu0 %v1347
    %1371 = vmatprep.subr.bf16.mxu0 %v1346
    %1372 = vmatpush1.bf16.msra.mxu0 %v1345
    %1373 = vmatprep.subr.bf16.mxu0 %v1344
    %1374 = vmatpush1.bf16.msra.mxu0 %v1343
    %1375 = vmatprep.subr.bf16.mxu0 %v1342
    %1376 = vmatpush1.bf16.msra.mxu0 %v1341
    %1377 = vmatprep.subr.bf16.mxu0 %v1340
    %1378 = vmatpush1.bf16.msra.mxu0 %v1339
    %1379 = vmatprep.subr.bf16.mxu0 %v1338
    %1380 = vmatpush1.bf16.msra.mxu0 %v1337
    %1381 = vmatprep.subr.bf16.mxu0 %v1336
    %1382 = vmatpush1.bf16.msra.mxu0 %v1335
    %1383 = vmatprep.subr.bf16.mxu0 0
    %1384 = vmatpush2.bf16.msra.mxu0 0
    %1385 = vmatprep.subr.bf16.mxu0 0
    %1386 = vmatpush2.bf16.msra.mxu0 0
    %1387 = vmatprep.subr.bf16.mxu0 0
    %1388 = vmatpush2.bf16.msra.mxu0 0
    %1389 = vmatprep.subr.bf16.mxu0 0
    %1390 = vmatpush2.bf16.msra.mxu0 0
    %1391 = vmatprep.subr.bf16.mxu0 0
    %1392 = vmatpush2.bf16.msra.mxu0 0
    %1393 = vmatprep.subr.bf16.mxu0 0
    %1394 = vmatpush2.bf16.msra.mxu0 0
    %1395 = vmatprep.subr.bf16.mxu0 0
    %1396 = vmatpush2.bf16.msra.mxu0 0
    %1397 = vmatprep.subr.bf16.mxu0 0
    %1398 = vmatpush2.bf16.msra.mxu0 0
    %1399 = vmatprep.mubr.bf16.mxu0 0
    %1400 = vmatmul.mubr.bf16.gmra.mxu0 %v1274
    %v1401 = vpop.f32.mrf.mxu0
    %v1402 = vadd.f32 %v1280, %v1401
    %v1403 = vpop.f32.mrf.mxu0
    %v1404 = vadd.f32 %v1284, %v1403
    %v1405 = vpop.f32.mrf.mxu0
    %v1406 = vpop.f32.mrf.mxu0
    %1407 = vdwg.mxu0
    %v1408 = vld [vmem:[%s11] sm:$0xff]
    %v1409 = vld [vmem:[%s11 + $0x8] sm:$0xff]
    %v1410 = vld [vmem:[%s11 + $0x10] sm:$0xff]
    %v1411 = vld [vmem:[%s11 + $0x18] sm:$0xff]
    %v1412 = vld [vmem:[%s11 + $0x20] sm:$0xff]
    %v1413 = vld [vmem:[%s11 + $0x28] sm:$0xff]
    %v1414 = vld [vmem:[%s11 + $0x30] sm:$0xff]
    %v1415 = vld [vmem:[%s11 + $0x38] sm:$0xff]
    %v1416 = vld [vmem:[%s11 + $0x40] sm:$0xff]
    %v1417 = vld [vmem:[%s11 + $0x48] sm:$0xff]
    %v1418 = vld [vmem:[%s11 + $0x50] sm:$0xff]
    %v1419 = vld [vmem:[%s11 + $0x58] sm:$0xff]
    %v1420 = vld [vmem:[%s11 + $0x60] sm:$0xff]
    %v1421 = vld [vmem:[%s11 + $0x68] sm:$0xff]
    %v1422 = vld [vmem:[%s11 + $0x70] sm:$0xff]
    %v1423 = vld [vmem:[%s11 + $0x78] sm:$0xff]
    %v1424 = vld [vmem:[%s11 + $0x80] sm:$0xff]
    %v1425 = vld [vmem:[%s11 + $0x88] sm:$0xff]
    %v1426 = vld [vmem:[%s11 + $0x90] sm:$0xff]
    %v1427 = vld [vmem:[%s11 + $0x98] sm:$0xff]
    %v1428 = vld [vmem:[%s11 + $0xa0] sm:$0xff]
    %v1429 = vld [vmem:[%s11 + $0xa8] sm:$0xff]
    %v1430 = vld [vmem:[%s11 + $0xb0] sm:$0xff]
    %v1431 = vld [vmem:[%s11 + $0xb8] sm:$0xff]
    %v1432 = vld [vmem:[%s11 + $0xc0] sm:$0xff]
    %v1433 = vld [vmem:[%s11 + $0xc8] sm:$0xff]
    %v1434 = vld [vmem:[%s11 + $0xd0] sm:$0xff]
    %v1435 = vld [vmem:[%s11 + $0xd8] sm:$0xff]
    %v1436 = vld [vmem:[%s11 + $0xe0] sm:$0xff]
    %v1437 = vld [vmem:[%s11 + $0xe8] sm:$0xff]
    %v1438 = vld [vmem:[%s11 + $0xf0] sm:$0xff]
    %v1439 = vld [vmem:[%s11 + $0xf8] sm:$0xff]
    %v1440 = vld [vmem:[%s11 + $0x100] sm:$0xff]
    %v1441 = vld [vmem:[%s11 + $0x108] sm:$0xff]
    %v1442 = vld [vmem:[%s11 + $0x110] sm:$0xff]
    %v1443 = vld [vmem:[%s11 + $0x118] sm:$0xff]
    %v1444 = vld [vmem:[%s11 + $0x120] sm:$0xff]
    %v1445 = vld [vmem:[%s11 + $0x128] sm:$0xff]
    %v1446 = vld [vmem:[%s11 + $0x130] sm:$0xff]
    %v1447 = vld [vmem:[%s11 + $0x138] sm:$0xff]
    %v1448 = vld [vmem:[%s11 + $0x140] sm:$0xff]
    %v1449 = vld [vmem:[%s11 + $0x148] sm:$0xff]
    %v1450 = vld [vmem:[%s11 + $0x150] sm:$0xff]
    %v1451 = vld [vmem:[%s11 + $0x158] sm:$0xff]
    %v1452 = vld [vmem:[%s11 + $0x160] sm:$0xff]
    %v1453 = vld [vmem:[%s11 + $0x168] sm:$0xff]
    %v1454 = vld [vmem:[%s11 + $0x170] sm:$0xff]
    %v1455 = vld [vmem:[%s11 + $0x178] sm:$0xff]
    %v1456 = vld [vmem:[%s11 + $0x180] sm:$0xff]
    %v1457 = vld [vmem:[%s11 + $0x188] sm:$0xff]
    %v1458 = vld [vmem:[%s11 + $0x190] sm:$0xff]
    %v1459 = vld [vmem:[%s11 + $0x198] sm:$0xff]
    %v1460 = vld [vmem:[%s11 + $0x1a0] sm:$0xff]
    %v1461 = vld [vmem:[%s11 + $0x1a8] sm:$0xff]
    %v1462 = vld [vmem:[%s11 + $0x1b0] sm:$0xff]
    %v1463 = vld [vmem:[%s11 + $0x1b8] sm:$0xff]
    %v1464 = vld [vmem:[%s11 + $0x1c0] sm:$0xff]
    %v1465 = vld [vmem:[%s11 + $0x1c8] sm:$0xff]
    %v1466 = vld [vmem:[%s11 + $0x1d0] sm:$0xff]
    %v1467 = vld [vmem:[%s11 + $0x1d8] sm:$0xff]
    %v1468 = vld [vmem:[%s11 + $0x1e0] sm:$0xff]
    %v1469 = vld [vmem:[%s11 + $0x1e8] sm:$0xff]
    %v1470 = vld [vmem:[%s11 + $0x1f0] sm:$0xff]
    %v1471 = vld [vmem:[%s11 + $0x1f8] sm:$0xff]
    %v1472 = vpack.c.bf16 %v1402, %v1402
    %v1473 = vpack.c.bf16 %v1404, %v1404
    %v1474 = vld [vmem:[%s2 + $0xe] sm:$0xf]
    %v1476 = vlaneseq
    %v1477 = vshrl.u32 %v1476, 7
    %v1478 = vsub.s32 0, %v1477
    %v1479 = vrot.slane %v1474, %v1478
    %v1480 = vlaneseq
    %v1481 = vshrl.u32 %v1480, 7
    %v1482 = vsub.s32 1, %v1481
    %v1483 = vrot.slane %v1474, %v1482
    %v1484 = vlaneseq
    %v1485 = vshrl.u32 %v1484, 7
    %v1486 = vsub.s32 2, %v1485
    %v1487 = vrot.slane %v1474, %v1486
    %v1488 = vlaneseq
    %v1489 = vshrl.u32 %v1488, 7
    %v1490 = vsub.s32 3, %v1489
    %v1491 = vrot.slane %v1474, %v1490
    %v1560 = vunpack.c.l.b16 %v1408
    %v1561 = vunpack.c.h.b16 %v1408
    %v1562 = vunpack.c.l.b16 %v1409
    %v1563 = vunpack.c.h.b16 %v1409
    %v1564 = vunpack.c.l.b16 %v1410
    %v1565 = vunpack.c.h.b16 %v1410
    %v1566 = vunpack.c.l.b16 %v1411
    %v1567 = vunpack.c.h.b16 %v1411
    %v1568 = vunpack.c.l.b16 %v1412
    %v1569 = vunpack.c.h.b16 %v1412
    %v1570 = vunpack.c.l.b16 %v1413
    %v1571 = vunpack.c.h.b16 %v1413
    %v1572 = vunpack.c.l.b16 %v1414
    %v1573 = vunpack.c.h.b16 %v1414
    %v1574 = vunpack.c.l.b16 %v1415
    %v1575 = vunpack.c.h.b16 %v1415
    %v1576 = vunpack.c.l.b16 %v1416
    %v1577 = vunpack.c.h.b16 %v1416
    %v1578 = vunpack.c.l.b16 %v1417
    %v1579 = vunpack.c.h.b16 %v1417
    %v1580 = vunpack.c.l.b16 %v1418
    %v1581 = vunpack.c.h.b16 %v1418
    %v1582 = vunpack.c.l.b16 %v1419
    %v1583 = vunpack.c.h.b16 %v1419
    %v1584 = vunpack.c.l.b16 %v1420
    %v1585 = vunpack.c.h.b16 %v1420
    %v1586 = vunpack.c.l.b16 %v1421
    %v1587 = vunpack.c.h.b16 %v1421
    %v1588 = vunpack.c.l.b16 %v1422
    %v1589 = vunpack.c.h.b16 %v1422
    %v1590 = vunpack.c.l.b16 %v1423
    %v1591 = vunpack.c.h.b16 %v1423
    %v1592 = vunpack.c.l.b16 %v1424
    %v1593 = vunpack.c.h.b16 %v1424
    %v1594 = vunpack.c.l.b16 %v1425
    %v1595 = vunpack.c.h.b16 %v1425
    %v1596 = vunpack.c.l.b16 %v1426
    %v1597 = vunpack.c.h.b16 %v1426
    %v1598 = vunpack.c.l.b16 %v1427
    %v1599 = vunpack.c.h.b16 %v1427
    %v1600 = vunpack.c.l.b16 %v1428
    %v1601 = vunpack.c.h.b16 %v1428
    %v1602 = vunpack.c.l.b16 %v1429
    %v1603 = vunpack.c.h.b16 %v1429
    %v1604 = vunpack.c.l.b16 %v1430
    %v1605 = vunpack.c.h.b16 %v1430
    %v1606 = vunpack.c.l.b16 %v1431
    %v1607 = vunpack.c.h.b16 %v1431
    %v1608 = vunpack.c.l.b16 %v1432
    %v1609 = vunpack.c.h.b16 %v1432
    %v1610 = vunpack.c.l.b16 %v1433
    %v1611 = vunpack.c.h.b16 %v1433
    %v1612 = vunpack.c.l.b16 %v1434
    %v1613 = vunpack.c.h.b16 %v1434
    %v1614 = vunpack.c.l.b16 %v1435
    %v1615 = vunpack.c.h.b16 %v1435
    %v1616 = vunpack.c.l.b16 %v1436
    %v1617 = vunpack.c.h.b16 %v1436
    %v1618 = vunpack.c.l.b16 %v1437
    %v1619 = vunpack.c.h.b16 %v1437
    %v1620 = vunpack.c.l.b16 %v1438
    %v1621 = vunpack.c.h.b16 %v1438
    %v1622 = vunpack.c.l.b16 %v1439
    %v1623 = vunpack.c.h.b16 %v1439
    %v1624 = vunpack.c.l.b16 %v1440
    %v1625 = vunpack.c.h.b16 %v1440
    %v1626 = vunpack.c.l.b16 %v1441
    %v1627 = vunpack.c.h.b16 %v1441
    %v1628 = vunpack.c.l.b16 %v1442
    %v1629 = vunpack.c.h.b16 %v1442
    %v1630 = vunpack.c.l.b16 %v1443
    %v1631 = vunpack.c.h.b16 %v1443
    %v1632 = vunpack.c.l.b16 %v1444
    %v1633 = vunpack.c.h.b16 %v1444
    %v1634 = vunpack.c.l.b16 %v1445
    %v1635 = vunpack.c.h.b16 %v1445
    %v1636 = vunpack.c.l.b16 %v1446
    %v1637 = vunpack.c.h.b16 %v1446
    %v1638 = vunpack.c.l.b16 %v1447
    %v1639 = vunpack.c.h.b16 %v1447
    %v1640 = vunpack.c.l.b16 %v1448
    %v1641 = vunpack.c.h.b16 %v1448
    %v1642 = vunpack.c.l.b16 %v1449
    %v1643 = vunpack.c.h.b16 %v1449
    %v1644 = vunpack.c.l.b16 %v1450
    %v1645 = vunpack.c.h.b16 %v1450
    %v1646 = vunpack.c.l.b16 %v1451
    %v1647 = vunpack.c.h.b16 %v1451
    %v1648 = vunpack.c.l.b16 %v1452
    %v1649 = vunpack.c.h.b16 %v1452
    %v1650 = vunpack.c.l.b16 %v1453
    %v1651 = vunpack.c.h.b16 %v1453
    %v1652 = vunpack.c.l.b16 %v1454
    %v1653 = vunpack.c.h.b16 %v1454
    %v1654 = vunpack.c.l.b16 %v1455
    %v1655 = vunpack.c.h.b16 %v1455
    %v1656 = vunpack.c.l.b16 %v1456
    %v1657 = vunpack.c.h.b16 %v1456
    %v1658 = vunpack.c.l.b16 %v1457
    %v1659 = vunpack.c.h.b16 %v1457
    %v1660 = vunpack.c.l.b16 %v1458
    %v1661 = vunpack.c.h.b16 %v1458
    %v1662 = vunpack.c.l.b16 %v1459
    %v1663 = vunpack.c.h.b16 %v1459
    %v1664 = vunpack.c.l.b16 %v1460
    %v1665 = vunpack.c.h.b16 %v1460
    %v1666 = vunpack.c.l.b16 %v1461
    %v1667 = vunpack.c.h.b16 %v1461
    %v1668 = vunpack.c.l.b16 %v1462
    %v1669 = vunpack.c.h.b16 %v1462
    %v1670 = vunpack.c.l.b16 %v1463
    %v1671 = vunpack.c.h.b16 %v1463
    %v1672 = vunpack.c.l.b16 %v1464
    %v1673 = vunpack.c.h.b16 %v1464
    %v1674 = vunpack.c.l.b16 %v1465
    %v1675 = vunpack.c.h.b16 %v1465
    %v1676 = vunpack.c.l.b16 %v1466
    %v1677 = vunpack.c.h.b16 %v1466
    %v1678 = vunpack.c.l.b16 %v1467
    %v1679 = vunpack.c.h.b16 %v1467
    %v1680 = vunpack.c.l.b16 %v1468
    %v1681 = vunpack.c.h.b16 %v1468
    %v1682 = vunpack.c.l.b16 %v1469
    %v1683 = vunpack.c.h.b16 %v1469
    %v1684 = vunpack.c.l.b16 %v1470
    %v1685 = vunpack.c.h.b16 %v1470
    %v1686 = vunpack.c.l.b16 %v1471
    %v1687 = vunpack.c.h.b16 %v1471
    %v1688 = vpack.c.b16 %v1564, %v1560
    %v1689 = vpack.c.b16 %v1565, %v1561
    %v1690 = vpack.c.b16 %v1566, %v1562
    %v1691 = vpack.c.b16 %v1567, %v1563
    %v1692 = vpack.c.b16 %v1572, %v1568
    %v1693 = vpack.c.b16 %v1573, %v1569
    %v1694 = vpack.c.b16 %v1574, %v1570
    %v1695 = vpack.c.b16 %v1575, %v1571
    %v1696 = vpack.c.b16 %v1580, %v1576
    %v1697 = vpack.c.b16 %v1581, %v1577
    %v1698 = vpack.c.b16 %v1582, %v1578
    %v1699 = vpack.c.b16 %v1583, %v1579
    %v1700 = vpack.c.b16 %v1588, %v1584
    %v1701 = vpack.c.b16 %v1589, %v1585
    %v1702 = vpack.c.b16 %v1590, %v1586
    %v1703 = vpack.c.b16 %v1591, %v1587
    %v1704 = vpack.c.b16 %v1596, %v1592
    %v1705 = vpack.c.b16 %v1597, %v1593
    %v1706 = vpack.c.b16 %v1598, %v1594
    %v1707 = vpack.c.b16 %v1599, %v1595
    %v1708 = vpack.c.b16 %v1604, %v1600
    %v1709 = vpack.c.b16 %v1605, %v1601
    %v1710 = vpack.c.b16 %v1606, %v1602
    %v1711 = vpack.c.b16 %v1607, %v1603
    %v1712 = vpack.c.b16 %v1612, %v1608
    %v1713 = vpack.c.b16 %v1613, %v1609
    %v1714 = vpack.c.b16 %v1614, %v1610
    %v1715 = vpack.c.b16 %v1615, %v1611
    %v1716 = vpack.c.b16 %v1620, %v1616
    %v1717 = vpack.c.b16 %v1621, %v1617
    %v1718 = vpack.c.b16 %v1622, %v1618
    %v1719 = vpack.c.b16 %v1623, %v1619
    %v1720 = vpack.c.b16 %v1628, %v1624
    %v1721 = vpack.c.b16 %v1629, %v1625
    %v1722 = vpack.c.b16 %v1630, %v1626
    %v1723 = vpack.c.b16 %v1631, %v1627
    %v1724 = vpack.c.b16 %v1636, %v1632
    %v1725 = vpack.c.b16 %v1637, %v1633
    %v1726 = vpack.c.b16 %v1638, %v1634
    %v1727 = vpack.c.b16 %v1639, %v1635
    %v1728 = vpack.c.b16 %v1644, %v1640
    %v1729 = vpack.c.b16 %v1645, %v1641
    %v1730 = vpack.c.b16 %v1646, %v1642
    %v1731 = vpack.c.b16 %v1647, %v1643
    %v1732 = vpack.c.b16 %v1652, %v1648
    %v1733 = vpack.c.b16 %v1653, %v1649
    %v1734 = vpack.c.b16 %v1654, %v1650
    %v1735 = vpack.c.b16 %v1655, %v1651
    %v1736 = vpack.c.b16 %v1660, %v1656
    %v1737 = vpack.c.b16 %v1661, %v1657
    %v1738 = vpack.c.b16 %v1662, %v1658
    %v1739 = vpack.c.b16 %v1663, %v1659
    %v1740 = vpack.c.b16 %v1668, %v1664
    %v1741 = vpack.c.b16 %v1669, %v1665
    %v1742 = vpack.c.b16 %v1670, %v1666
    %v1743 = vpack.c.b16 %v1671, %v1667
    %v1744 = vpack.c.b16 %v1676, %v1672
    %v1745 = vpack.c.b16 %v1677, %v1673
    %v1746 = vpack.c.b16 %v1678, %v1674
    %v1747 = vpack.c.b16 %v1679, %v1675
    %v1748 = vpack.c.b16 %v1684, %v1680
    %v1749 = vpack.c.b16 %v1685, %v1681
    %v1750 = vpack.c.b16 %v1686, %v1682
    %v1751 = vpack.c.b16 %v1687, %v1683
    %1816 = vmatprep.subr.bf16.mxu0 %v1717
    %1817 = vmatpush1.bf16.msra.mxu0 %v1716
    %1818 = vmatprep.subr.bf16.mxu0 %v1713
    %1819 = vmatpush1.bf16.msra.mxu0 %v1712
    %1820 = vmatprep.subr.bf16.mxu0 %v1709
    %1821 = vmatpush1.bf16.msra.mxu0 %v1708
    %1822 = vmatprep.subr.bf16.mxu0 %v1705
    %1823 = vmatpush1.bf16.msra.mxu0 %v1704
    %1824 = vmatprep.subr.bf16.mxu0 %v1701
    %1825 = vmatpush1.bf16.msra.mxu0 %v1700
    %1826 = vmatprep.subr.bf16.mxu0 %v1697
    %1827 = vmatpush1.bf16.msra.mxu0 %v1696
    %1828 = vmatprep.subr.bf16.mxu0 %v1693
    %1829 = vmatpush1.bf16.msra.mxu0 %v1692
    %1830 = vmatprep.subr.bf16.mxu0 %v1689
    %1831 = vmatpush1.bf16.msra.mxu0 %v1688
    %1832 = vmatprep.subr.bf16.mxu0 %v1749
    %1833 = vmatpush2.bf16.msra.mxu0 %v1748
    %1834 = vmatprep.subr.bf16.mxu0 %v1745
    %1835 = vmatpush2.bf16.msra.mxu0 %v1744
    %1836 = vmatprep.subr.bf16.mxu0 %v1741
    %1837 = vmatpush2.bf16.msra.mxu0 %v1740
    %1838 = vmatprep.subr.bf16.mxu0 %v1737
    %1839 = vmatpush2.bf16.msra.mxu0 %v1736
    %1840 = vmatprep.subr.bf16.mxu0 %v1733
    %1841 = vmatpush2.bf16.msra.mxu0 %v1732
    %1842 = vmatprep.subr.bf16.mxu0 %v1729
    %1843 = vmatpush2.bf16.msra.mxu0 %v1728
    %1844 = vmatprep.subr.bf16.mxu0 %v1725
    %1845 = vmatpush2.bf16.msra.mxu0 %v1724
    %1846 = vmatprep.subr.bf16.mxu0 %v1721
    %1847 = vmatpush2.bf16.msra.mxu0 %v1720
    %1848 = vmatprep.mubr.bf16.mxu0 %v1473
    %1849 = vmatmul.mubr.bf16.gmra.mxu0 %v1472
    %v1850 = vpop.f32.mrf.mxu0
    %v1851 = vadd.f32 %v1479, %v1850
    %v1852 = vpop.f32.mrf.mxu0
    %v1853 = vadd.f32 %v1483, %v1852
    %v1854 = vpop.f32.mrf.mxu0
    %v1855 = vpop.f32.mrf.mxu0
    %1856 = vdwg.mxu0
    %1857 = vmatprep.subr.bf16.mxu0 %v1719
    %1858 = vmatpush1.bf16.msra.mxu0 %v1718
    %1859 = vmatprep.subr.bf16.mxu0 %v1715
    %1860 = vmatpush1.bf16.msra.mxu0 %v1714
    %1861 = vmatprep.subr.bf16.mxu0 %v1711
    %1862 = vmatpush1.bf16.msra.mxu0 %v1710
    %1863 = vmatprep.subr.bf16.mxu0 %v1707
    %1864 = vmatpush1.bf16.msra.mxu0 %v1706
    %1865 = vmatprep.subr.bf16.mxu0 %v1703
    %1866 = vmatpush1.bf16.msra.mxu0 %v1702
    %1867 = vmatprep.subr.bf16.mxu0 %v1699
    %1868 = vmatpush1.bf16.msra.mxu0 %v1698
    %1869 = vmatprep.subr.bf16.mxu0 %v1695
    %1870 = vmatpush1.bf16.msra.mxu0 %v1694
    %1871 = vmatprep.subr.bf16.mxu0 %v1691
    %1872 = vmatpush1.bf16.msra.mxu0 %v1690
    %1873 = vmatprep.subr.bf16.mxu0 %v1751
    %1874 = vmatpush2.bf16.msra.mxu0 %v1750
    %1875 = vmatprep.subr.bf16.mxu0 %v1747
    %1876 = vmatpush2.bf16.msra.mxu0 %v1746
    %1877 = vmatprep.subr.bf16.mxu0 %v1743
    %1878 = vmatpush2.bf16.msra.mxu0 %v1742
    %1879 = vmatprep.subr.bf16.mxu0 %v1739
    %1880 = vmatpush2.bf16.msra.mxu0 %v1738
    %1881 = vmatprep.subr.bf16.mxu0 %v1735
    %1882 = vmatpush2.bf16.msra.mxu0 %v1734
    %1883 = vmatprep.subr.bf16.mxu0 %v1731
    %1884 = vmatpush2.bf16.msra.mxu0 %v1730
    %1885 = vmatprep.subr.bf16.mxu0 %v1727
    %1886 = vmatpush2.bf16.msra.mxu0 %v1726
    %1887 = vmatprep.subr.bf16.mxu0 %v1723
    %1888 = vmatpush2.bf16.msra.mxu0 %v1722
    %1889 = vmatprep.mubr.bf16.mxu0 %v1473
    %1890 = vmatmul.mubr.bf16.gmra.mxu0 %v1472
    %v1891 = vpop.f32.mrf.mxu0
    %v1892 = vadd.f32 %v1487, %v1891
    %v1893 = vpop.f32.mrf.mxu0
    %v1894 = vadd.f32 %v1491, %v1893
    %v1895 = vpop.f32.mrf.mxu0
    %v1896 = vpop.f32.mrf.mxu0
    %1897 = vdwg.mxu0
    %v1898 = vmax.f32 %v1851, 0.0
    %v1899 = vmax.f32 %v1853, 0.0
    %v1900 = vmax.f32 %v1892, 0.0
    %v1901 = vmax.f32 %v1894, 0.0
    %v1902 = vld [vmem:[%s12] sm:$0xf]
    %v1903 = vld [vmem:[%s12 + $0x4] sm:$0xf]
    %v1904 = vld [vmem:[%s12 + $0x8] sm:$0xf]
    %v1905 = vld [vmem:[%s12 + $0xc] sm:$0xf]
    %v1906 = vld [vmem:[%s12 + $0x10] sm:$0xf]
    %v1907 = vld [vmem:[%s12 + $0x14] sm:$0xf]
    %v1908 = vld [vmem:[%s12 + $0x18] sm:$0xf]
    %v1909 = vld [vmem:[%s12 + $0x1c] sm:$0xf]
    %v1910 = vld [vmem:[%s12 + $0x20] sm:$0xf]
    %v1911 = vld [vmem:[%s12 + $0x24] sm:$0xf]
    %v1912 = vld [vmem:[%s12 + $0x28] sm:$0xf]
    %v1913 = vld [vmem:[%s12 + $0x2c] sm:$0xf]
    %v1914 = vld [vmem:[%s12 + $0x30] sm:$0xf]
    %v1915 = vld [vmem:[%s12 + $0x34] sm:$0xf]
    %v1916 = vld [vmem:[%s12 + $0x38] sm:$0xf]
    %v1917 = vld [vmem:[%s12 + $0x3c] sm:$0xf]
    %v1918 = vld [vmem:[%s12 + $0x40] sm:$0xf]
    %v1919 = vld [vmem:[%s12 + $0x44] sm:$0xf]
    %v1920 = vld [vmem:[%s12 + $0x48] sm:$0xf]
    %v1921 = vld [vmem:[%s12 + $0x4c] sm:$0xf]
    %v1922 = vld [vmem:[%s12 + $0x50] sm:$0xf]
    %v1923 = vld [vmem:[%s12 + $0x54] sm:$0xf]
    %v1924 = vld [vmem:[%s12 + $0x58] sm:$0xf]
    %v1925 = vld [vmem:[%s12 + $0x5c] sm:$0xf]
    %v1926 = vld [vmem:[%s12 + $0x60] sm:$0xf]
    %v1927 = vld [vmem:[%s12 + $0x64] sm:$0xf]
    %v1928 = vld [vmem:[%s12 + $0x68] sm:$0xf]
    %v1929 = vld [vmem:[%s12 + $0x6c] sm:$0xf]
    %v1930 = vld [vmem:[%s12 + $0x70] sm:$0xf]
    %v1931 = vld [vmem:[%s12 + $0x74] sm:$0xf]
    %v1932 = vld [vmem:[%s12 + $0x78] sm:$0xf]
    %v1933 = vld [vmem:[%s12 + $0x7c] sm:$0xf]
    %v1934 = vld [vmem:[%s12 + $0x80] sm:$0xf]
    %v1935 = vld [vmem:[%s12 + $0x84] sm:$0xf]
    %v1936 = vld [vmem:[%s12 + $0x88] sm:$0xf]
    %v1937 = vld [vmem:[%s12 + $0x8c] sm:$0xf]
    %v1938 = vld [vmem:[%s12 + $0x90] sm:$0xf]
    %v1939 = vld [vmem:[%s12 + $0x94] sm:$0xf]
    %v1940 = vld [vmem:[%s12 + $0x98] sm:$0xf]
    %v1941 = vld [vmem:[%s12 + $0x9c] sm:$0xf]
    %v1942 = vld [vmem:[%s12 + $0xa0] sm:$0xf]
    %v1943 = vld [vmem:[%s12 + $0xa4] sm:$0xf]
    %v1944 = vld [vmem:[%s12 + $0xa8] sm:$0xf]
    %v1945 = vld [vmem:[%s12 + $0xac] sm:$0xf]
    %v1946 = vld [vmem:[%s12 + $0xb0] sm:$0xf]
    %v1947 = vld [vmem:[%s12 + $0xb4] sm:$0xf]
    %v1948 = vld [vmem:[%s12 + $0xb8] sm:$0xf]
    %v1949 = vld [vmem:[%s12 + $0xbc] sm:$0xf]
    %v1950 = vld [vmem:[%s12 + $0xc0] sm:$0xf]
    %v1951 = vld [vmem:[%s12 + $0xc4] sm:$0xf]
    %v1952 = vld [vmem:[%s12 + $0xc8] sm:$0xf]
    %v1953 = vld [vmem:[%s12 + $0xcc] sm:$0xf]
    %v1954 = vld [vmem:[%s12 + $0xd0] sm:$0xf]
    %v1955 = vld [vmem:[%s12 + $0xd4] sm:$0xf]
    %v1956 = vld [vmem:[%s12 + $0xd8] sm:$0xf]
    %v1957 = vld [vmem:[%s12 + $0xdc] sm:$0xf]
    %v1958 = vld [vmem:[%s12 + $0xe0] sm:$0xf]
    %v1959 = vld [vmem:[%s12 + $0xe4] sm:$0xf]
    %v1960 = vld [vmem:[%s12 + $0xe8] sm:$0xf]
    %v1961 = vld [vmem:[%s12 + $0xec] sm:$0xf]
    %v1962 = vld [vmem:[%s12 + $0xf0] sm:$0xf]
    %v1963 = vld [vmem:[%s12 + $0xf4] sm:$0xf]
    %v1964 = vld [vmem:[%s12 + $0xf8] sm:$0xf]
    %v1965 = vld [vmem:[%s12 + $0xfc] sm:$0xf]
    %v1966 = vpack.c.bf16 %v1898, %v1898
    %v1967 = vpack.c.bf16 %v1899, %v1899
    %v1968 = vpack.c.bf16 %v1900, %v1900
    %v1969 = vpack.c.bf16 %v1901, %v1901
    %v1970 = vld [vmem:[%s2 + $0x12] sm:$0x1]
    %v1972 = vlaneseq
    %v1973 = vshrl.u32 %v1972, 7
    %v1974 = vsub.s32 0, %v1973
    %v1975 = vrot.slane %v1970, %v1974
    %v2041 = vunpack.c.l.b16 %v1902
    %v2042 = vunpack.c.l.b16 %v1903
    %v2043 = vunpack.c.l.b16 %v1904
    %v2044 = vunpack.c.l.b16 %v1905
    %v2045 = vunpack.c.l.b16 %v1906
    %v2046 = vunpack.c.l.b16 %v1907
    %v2047 = vunpack.c.l.b16 %v1908
    %v2048 = vunpack.c.l.b16 %v1909
    %v2049 = vunpack.c.l.b16 %v1910
    %v2050 = vunpack.c.l.b16 %v1911
    %v2051 = vunpack.c.l.b16 %v1912
    %v2052 = vunpack.c.l.b16 %v1913
    %v2053 = vunpack.c.l.b16 %v1914
    %v2054 = vunpack.c.l.b16 %v1915
    %v2055 = vunpack.c.l.b16 %v1916
    %v2056 = vunpack.c.l.b16 %v1917
    %v2057 = vunpack.c.l.b16 %v1918
    %v2058 = vunpack.c.l.b16 %v1919
    %v2059 = vunpack.c.l.b16 %v1920
    %v2060 = vunpack.c.l.b16 %v1921
    %v2061 = vunpack.c.l.b16 %v1922
    %v2062 = vunpack.c.l.b16 %v1923
    %v2063 = vunpack.c.l.b16 %v1924
    %v2064 = vunpack.c.l.b16 %v1925
    %v2065 = vunpack.c.l.b16 %v1926
    %v2066 = vunpack.c.l.b16 %v1927
    %v2067 = vunpack.c.l.b16 %v1928
    %v2068 = vunpack.c.l.b16 %v1929
    %v2069 = vunpack.c.l.b16 %v1930
    %v2070 = vunpack.c.l.b16 %v1931
    %v2071 = vunpack.c.l.b16 %v1932
    %v2072 = vunpack.c.l.b16 %v1933
    %v2073 = vunpack.c.l.b16 %v1934
    %v2074 = vunpack.c.l.b16 %v1935
    %v2075 = vunpack.c.l.b16 %v1936
    %v2076 = vunpack.c.l.b16 %v1937
    %v2077 = vunpack.c.l.b16 %v1938
    %v2078 = vunpack.c.l.b16 %v1939
    %v2079 = vunpack.c.l.b16 %v1940
    %v2080 = vunpack.c.l.b16 %v1941
    %v2081 = vunpack.c.l.b16 %v1942
    %v2082 = vunpack.c.l.b16 %v1943
    %v2083 = vunpack.c.l.b16 %v1944
    %v2084 = vunpack.c.l.b16 %v1945
    %v2085 = vunpack.c.l.b16 %v1946
    %v2086 = vunpack.c.l.b16 %v1947
    %v2087 = vunpack.c.l.b16 %v1948
    %v2088 = vunpack.c.l.b16 %v1949
    %v2089 = vunpack.c.l.b16 %v1950
    %v2090 = vunpack.c.l.b16 %v1951
    %v2091 = vunpack.c.l.b16 %v1952
    %v2092 = vunpack.c.l.b16 %v1953
    %v2093 = vunpack.c.l.b16 %v1954
    %v2094 = vunpack.c.l.b16 %v1955
    %v2095 = vunpack.c.l.b16 %v1956
    %v2096 = vunpack.c.l.b16 %v1957
    %v2097 = vunpack.c.l.b16 %v1958
    %v2098 = vunpack.c.l.b16 %v1959
    %v2099 = vunpack.c.l.b16 %v1960
    %v2100 = vunpack.c.l.b16 %v1961
    %v2101 = vunpack.c.l.b16 %v1962
    %v2102 = vunpack.c.l.b16 %v1963
    %v2103 = vunpack.c.l.b16 %v1964
    %v2104 = vunpack.c.l.b16 %v1965
    %v2105 = vpack.c.b16 %v2042, %v2041
    %v2106 = vpack.c.b16 %v2044, %v2043
    %v2107 = vpack.c.b16 %v2046, %v2045
    %v2108 = vpack.c.b16 %v2048, %v2047
    %v2109 = vpack.c.b16 %v2050, %v2049
    %v2110 = vpack.c.b16 %v2052, %v2051
    %v2111 = vpack.c.b16 %v2054, %v2053
    %v2112 = vpack.c.b16 %v2056, %v2055
    %v2113 = vpack.c.b16 %v2058, %v2057
    %v2114 = vpack.c.b16 %v2060, %v2059
    %v2115 = vpack.c.b16 %v2062, %v2061
    %v2116 = vpack.c.b16 %v2064, %v2063
    %v2117 = vpack.c.b16 %v2066, %v2065
    %v2118 = vpack.c.b16 %v2068, %v2067
    %v2119 = vpack.c.b16 %v2070, %v2069
    %v2120 = vpack.c.b16 %v2072, %v2071
    %v2121 = vpack.c.b16 %v2074, %v2073
    %v2122 = vpack.c.b16 %v2076, %v2075
    %v2123 = vpack.c.b16 %v2078, %v2077
    %v2124 = vpack.c.b16 %v2080, %v2079
    %v2125 = vpack.c.b16 %v2082, %v2081
    %v2126 = vpack.c.b16 %v2084, %v2083
    %v2127 = vpack.c.b16 %v2086, %v2085
    %v2128 = vpack.c.b16 %v2088, %v2087
    %v2129 = vpack.c.b16 %v2090, %v2089
    %v2130 = vpack.c.b16 %v2092, %v2091
    %v2131 = vpack.c.b16 %v2094, %v2093
    %v2132 = vpack.c.b16 %v2096, %v2095
    %v2133 = vpack.c.b16 %v2098, %v2097
    %v2134 = vpack.c.b16 %v2100, %v2099
    %v2135 = vpack.c.b16 %v2102, %v2101
    %v2136 = vpack.c.b16 %v2104, %v2103
    %2169 = vmatprep.subr.bf16.mxu0 0
    %2170 = vmatpush1.bf16.msra.mxu0 %v2112
    %2171 = vmatprep.subr.bf16.mxu0 0
    %2172 = vmatpush1.bf16.msra.mxu0 %v2111
    %2173 = vmatprep.subr.bf16.mxu0 0
    %2174 = vmatpush1.bf16.msra.mxu0 %v2110
    %2175 = vmatprep.subr.bf16.mxu0 0
    %2176 = vmatpush1.bf16.msra.mxu0 %v2109
    %2177 = vmatprep.subr.bf16.mxu0 0
    %2178 = vmatpush1.bf16.msra.mxu0 %v2108
    %2179 = vmatprep.subr.bf16.mxu0 0
    %2180 = vmatpush1.bf16.msra.mxu0 %v2107
    %2181 = vmatprep.subr.bf16.mxu0 0
    %2182 = vmatpush1.bf16.msra.mxu0 %v2106
    %2183 = vmatprep.subr.bf16.mxu0 0
    %2184 = vmatpush1.bf16.msra.mxu0 %v2105
    %2185 = vmatprep.subr.bf16.mxu0 0
    %2186 = vmatpush2.bf16.msra.mxu0 %v2120
    %2187 = vmatprep.subr.bf16.mxu0 0
    %2188 = vmatpush2.bf16.msra.mxu0 %v2119
    %2189 = vmatprep.subr.bf16.mxu0 0
    %2190 = vmatpush2.bf16.msra.mxu0 %v2118
    %2191 = vmatprep.subr.bf16.mxu0 0
    %2192 = vmatpush2.bf16.msra.mxu0 %v2117
    %2193 = vmatprep.subr.bf16.mxu0 0
    %2194 = vmatpush2.bf16.msra.mxu0 %v2116
    %2195 = vmatprep.subr.bf16.mxu0 0
    %2196 = vmatpush2.bf16.msra.mxu0 %v2115
    %2197 = vmatprep.subr.bf16.mxu0 0
    %2198 = vmatpush2.bf16.msra.mxu0 %v2114
    %2199 = vmatprep.subr.bf16.mxu0 0
    %2200 = vmatpush2.bf16.msra.mxu0 %v2113
    %2201 = vmatprep.mubr.bf16.mxu0 %v1967
    %2202 = vmatmul.mubr.bf16.gmra.mxu0 %v1966
    %v2203 = vpop.f32.mrf.mxu0
    %v2204 = vadd.f32 %v1975, %v2203
    %v2205 = vpop.f32.mrf.mxu0
    %v2206 = vpop.f32.mrf.mxu0
    %v2207 = vpop.f32.mrf.mxu0
    %2208 = vdwg.mxu0
    %2209 = vmatprep.subr.bf16.mxu0 0
    %2210 = vmatpush1.bf16.msra.mxu0 %v2128
    %2211 = vmatprep.subr.bf16.mxu0 0
    %2212 = vmatpush1.bf16.msra.mxu0 %v2127
    %2213 = vmatprep.subr.bf16.mxu0 0
    %2214 = vmatpush1.bf16.msra.mxu0 %v2126
    %2215 = vmatprep.subr.bf16.mxu0 0
    %2216 = vmatpush1.bf16.msra.mxu0 %v2125
    %2217 = vmatprep.subr.bf16.mxu0 0
    %2218 = vmatpush1.bf16.msra.mxu0 %v2124
    %2219 = vmatprep.subr.bf16.mxu0 0
    %2220 = vmatpush1.bf16.msra.mxu0 %v2123
    %2221 = vmatprep.subr.bf16.mxu0 0
    %2222 = vmatpush1.bf16.msra.mxu0 %v2122
    %2223 = vmatprep.subr.bf16.mxu0 0
    %2224 = vmatpush1.bf16.msra.mxu0 %v2121
    %2225 = vmatprep.subr.bf16.mxu0 0
    %2226 = vmatpush2.bf16.msra.mxu0 %v2136
    %2227 = vmatprep.subr.bf16.mxu0 0
    %2228 = vmatpush2.bf16.msra.mxu0 %v2135
    %2229 = vmatprep.subr.bf16.mxu0 0
    %2230 = vmatpush2.bf16.msra.mxu0 %v2134
    %2231 = vmatprep.subr.bf16.mxu0 0
    %2232 = vmatpush2.bf16.msra.mxu0 %v2133
    %2233 = vmatprep.subr.bf16.mxu0 0
    %2234 = vmatpush2.bf16.msra.mxu0 %v2132
    %2235 = vmatprep.subr.bf16.mxu0 0
    %2236 = vmatpush2.bf16.msra.mxu0 %v2131
    %2237 = vmatprep.subr.bf16.mxu0 0
    %2238 = vmatpush2.bf16.msra.mxu0 %v2130
    %2239 = vmatprep.subr.bf16.mxu0 0
    %2240 = vmatpush2.bf16.msra.mxu0 %v2129
    %2241 = vmatprep.mubr.bf16.mxu0 %v1969
    %2242 = vmatmul.mubr.bf16.gmra.mxu0 %v1968
    %v2243 = vpop.f32.mrf.mxu0
    %v2244 = vadd.f32 %v2204, %v2243
    %v2245 = vpop.f32.mrf.mxu0
    %v2246 = vpop.f32.mrf.mxu0
    %v2247 = vpop.f32.mrf.mxu0
    %2248 = vdwg.mxu0
    %v2249 = vld [vmem:[#allocation2] sm:$0xf]
    %v2250 = vld [vmem:[#allocation2 + $0x4] sm:$0xf]
    %v2251 = vld [vmem:[#allocation2 + $0x8] sm:$0xf]
    %v2252 = vld [vmem:[#allocation2 + $0xc] sm:$0xf]
    %v2253 = vld [vmem:[#allocation2 + $0x10] sm:$0xf]
    %v2254 = vld [vmem:[#allocation2 + $0x14] sm:$0xf]
    %v2255 = vld [vmem:[#allocation2 + $0x18] sm:$0xf]
    %v2256 = vld [vmem:[#allocation2 + $0x1c] sm:$0xf]
    %v2257 = vpack.c.bf16 %v2244, %v2244
    %v2258 = vld [vmem:[%s2 + $0x13] sm:$0x1]
    %v2260 = vlaneseq
    %v2261 = vshrl.u32 %v2260, 7
    %v2262 = vsub.s32 0, %v2261
    %v2263 = vrot.slane %v2258, %v2262
    %v2273 = vunpack.c.l.b16 %v2249
    %v2274 = vunpack.c.l.b16 %v2250
    %v2275 = vunpack.c.l.b16 %v2251
    %v2276 = vunpack.c.l.b16 %v2252
    %v2277 = vunpack.c.l.b16 %v2253
    %v2278 = vunpack.c.l.b16 %v2254
    %v2279 = vunpack.c.l.b16 %v2255
    %v2280 = vunpack.c.l.b16 %v2256
    %v2281 = vpack.c.b16 %v2274, %v2273
    %v2282 = vpack.c.b16 %v2276, %v2275
    %v2283 = vpack.c.b16 %v2278, %v2277
    %v2284 = vpack.c.b16 %v2280, %v2279
    %v2290 = vsel %vm245, %v2257, 0
    %2292 = vmatprep.subr.bf16.mxu0 0
    %2293 = vmatpush1.bf16.msra.mxu0 0
    %2294 = vmatprep.subr.bf16.mxu0 0
    %2295 = vmatpush1.bf16.msra.mxu0 0
    %2296 = vmatprep.subr.bf16.mxu0 0
    %2297 = vmatpush1.bf16.msra.mxu0 0
    %2298 = vmatprep.subr.bf16.mxu0 0
    %2299 = vmatpush1.bf16.msra.mxu0 0
    %2300 = vmatprep.subr.bf16.mxu0 0
    %2301 = vmatpush1.bf16.msra.mxu0 %v2284
    %2302 = vmatprep.subr.bf16.mxu0 0
    %2303 = vmatpush1.bf16.msra.mxu0 %v2283
    %2304 = vmatprep.subr.bf16.mxu0 0
    %2305 = vmatpush1.bf16.msra.mxu0 %v2282
    %2306 = vmatprep.subr.bf16.mxu0 0
    %2307 = vmatpush1.bf16.msra.mxu0 %v2281
    %2308 = vmatprep.subr.bf16.mxu0 0
    %2309 = vmatpush2.bf16.msra.mxu0 0
    %2310 = vmatprep.subr.bf16.mxu0 0
    %2311 = vmatpush2.bf16.msra.mxu0 0
    %2312 = vmatprep.subr.bf16.mxu0 0
    %2313 = vmatpush2.bf16.msra.mxu0 0
    %2314 = vmatprep.subr.bf16.mxu0 0
    %2315 = vmatpush2.bf16.msra.mxu0 0
    %2316 = vmatprep.subr.bf16.mxu0 0
    %2317 = vmatpush2.bf16.msra.mxu0 0
    %2318 = vmatprep.subr.bf16.mxu0 0
    %2319 = vmatpush2.bf16.msra.mxu0 0
    %2320 = vmatprep.subr.bf16.mxu0 0
    %2321 = vmatpush2.bf16.msra.mxu0 0
    %2322 = vmatprep.subr.bf16.mxu0 0
    %2323 = vmatpush2.bf16.msra.mxu0 0
    %2324 = vmatprep.mubr.bf16.mxu0 0
    %2325 = vmatmul.mubr.bf16.gmra.mxu0 %v2290
    %v2326 = vpop.f32.mrf.mxu0
    %v2327 = vadd.f32 %v2263, %v2326
    %v2328 = vpop.f32.mrf.mxu0
    %v2329 = vpop.f32.mrf.mxu0
    %v2330 = vpop.f32.mrf.mxu0
    %2331 = vdwg.mxu0
    %2332 = vst [vmem:[%s14] sm:$0xff] %v2327
    // Predicated region
    $region62: #{critic_forward.1} parent=1 // pred_check
      _
    $region63: #{critic_forward.1} parent=1 // pred_check_branch
      %2334 = sbr.rel (0) target = $region65
    $region64: #{critic_forward.1} parent=1 // pred_region
      _
    $region65: #{critic_forward.1} parent=1 // pred_fallthru
      _
    // Predicated region
    $region66: #{critic_forward.1} parent=1 // pred_check
      _
    $region67: #{critic_forward.1} parent=1 // pred_check_branch
      %2336 = sbr.rel (0) target = $region69
    $region68: #{critic_forward.1} parent=1 // pred_region
      _
    $region69: #{critic_forward.1} parent=1 // pred_fallthru
      _
    %2337 = vsyncpa [#allocation3], 1

</llo_original>
